<compile_context>
chip_gen: v5e
topology: v5e:2x2
jax: 0.10.0
libtpu: 0.0.40
codegen_flags: <defaults>
</compile_context>

<pallas_src>
from functools import partial

import jax
import jax.numpy as jnp
from jax.experimental import pallas as pl
from jax.experimental.pallas import tpu as pltpu


def _round_up(x, m):
    return ((x + m - 1) // m) * m


def _neg_pow(deg, p):
    """deg^(-p) with deg==0 -> 0 (matches masked_fill(norm==inf, 0); deg>=1 with self-loops)."""
    safe = jnp.where(deg > 0.0, deg, 1.0)
    if p == 0.0:
        val = jnp.ones_like(deg)
    elif p == 1.0:
        val = pl.reciprocal(safe, approx=True)     # EUP slot, effectively free
    elif p == 0.5:
        val = jax.lax.rsqrt(safe)
    else:
        val = jnp.exp(jnp.log(safe) * (-p))        # general exponent path
    return jnp.where(deg > 0.0, val, 0.0)


def _encoder_kernel(deg_out_ref, deg_in_ref, x_ref, w1_ref, b1_ref, w2_ref, b2_ref,
                    a1_ref, a2_ref, o_ref, g_ref, h_ref, *, alpha, beta, tv):
    """Fused two-layer directed-GCN encoder.

    grid = (phase, dst_tile); phase 0 = conv1 (+relu), phase 1 = conv2 (flipped graph).
      deg_out/deg_in : [Vp, 1]  f32   node degrees (self-loops included)
      x              : [Vp, C]  f32   padded input features
      w1,b1,w2,b2    : padded linear params ([C, C], [1, C])
      a1             : [TV, Vp] bf16  A[dst, src] row tile      (layer-1 aggregation)
      a2             : [TV, Vp] bf16  A^T[dst', src'] row tile  (layer-2, flipped graph)
      o              : [TV, C]  f32   output tile (written only in phase 1)
      g (scratch)    : [Vp, C]  bf16  deg^-alpha-scaled linear features of current layer
      h (scratch)    : [Vp, C]  f32   relu(conv1 output), consumed by conv2
    """
    phase = pl.program_id(0)
    t = pl.program_id(1)
    row0 = pl.multiple_of(t * tv, tv)

    # ---- phase 0, first tile only: g1 = deg_out^-alpha * (x @ W1 + b1) for all nodes ----
    @pl.when(jnp.logical_and(phase == 0, t == 0))
    def _():
        h1 = jnp.dot(x_ref[...], w1_ref[...], preferred_element_type=jnp.float32) + b1_ref[...]
        if alpha != 0.0:
            h1 = h1 * _neg_pow(deg_out_ref[...], alpha)
        g_ref[...] = h1.astype(g_ref.dtype)

    # ---- phase 0: conv1 aggregation for this dst tile, relu, stash into h scratch ----
    @pl.when(phase == 0)
    def _():
        agg = jnp.dot(a1_ref[...], g_ref[...], preferred_element_type=jnp.float32)
        if beta != 0.0:
            agg = agg * _neg_pow(deg_in_ref[pl.ds(row0, tv), :], beta)
        h_ref[pl.ds(row0, tv), :] = jnp.maximum(agg, 0.0)

    # ---- phase 1, first tile only: g2 = deg_in^-alpha * (h @ W2 + b2) ----
    # (flipped graph's out-degree == original in-degree; self-loops are symmetric)
    @pl.when(jnp.logical_and(phase == 1, t == 0))
    def _():
        h2 = jnp.dot(h_ref[...], w2_ref[...], preferred_element_type=jnp.float32) + b2_ref[...]
        if alpha != 0.0:
            h2 = h2 * _neg_pow(deg_in_ref[...], alpha)
        g_ref[...] = h2.astype(g_ref.dtype)

    # ---- phase 1: conv2 aggregation (flipped adjacency) for this dst tile -> output ----
    @pl.when(phase == 1)
    def _():
        agg = jnp.dot(a2_ref[...], g_ref[...], preferred_element_type=jnp.float32)
        if beta != 0.0:
            agg = agg * _neg_pow(deg_out_ref[pl.ds(row0, tv), :], beta)
        o_ref[...] = agg.astype(o_ref.dtype)


def source_gcn_conv_encoder(x, edge_index, params, *, alpha=1.0, beta=0.0,
                            self_loops=True, tile=128):
    # TODO(synk): adaptive=True (learnable alpha/beta gating) path is not implemented;
    # only the default adaptive=False path of SourceGCNConvEncoder is covered.
    v, c_in = x.shape
    c_hid = params["w1"].shape[1]
    c_out = params["w2"].shape[1]

    cp = _round_up(max(c_in, c_hid, c_out, 128), 128)     # lane-dense feature width
    tv = tile                                             # dst-node tile (multiple of 128)
    v_pad = _round_up(max(v, tv), tv)
    n_t = v_pad // tv

    src, dst = edge_index[0], edge_index[1]
    e_ones = jnp.ones(src.shape, jnp.float32)
    node = (jnp.arange(v_pad) < v).astype(jnp.float32)

    # Degrees straight from the edge list (O(E)); +1 self-loop per real node.
    deg_out = jnp.zeros((v_pad,), jnp.float32).at[src].add(e_ones)
    deg_in = jnp.zeros((v_pad,), jnp.float32).at[dst].add(e_ones)
    if self_loops:
        deg_out = deg_out + node
        deg_in = deg_in + node
    deg_out = deg_out.reshape(v_pad, 1)
    deg_in = deg_in.reshape(v_pad, 1)

    # Dense adjacency stored transposed as A[dst, src], built once, in bf16
    # (integer edge counts are exact).  conv2's flipped graph is exactly A^T,
    # materialized up front so both phases run the same plain row-tile matmul.
    a1 = jnp.zeros((v_pad, v_pad), jnp.float32).at[dst, src].add(1.0)
    if self_loops:
        a1 = a1 + jnp.diag(node)
    a1 = a1.astype(jnp.bfloat16)
    a2 = a1.T

    def pad2(m, r, c):
        m = m.astype(jnp.float32)
        return jnp.pad(m, ((0, r - m.shape[0]), (0, c - m.shape[1])))

    x_p = pad2(x, v_pad, cp)
    w1_p = pad2(params["w1"], cp, cp)
    b1_p = pad2(params["b1"].reshape(1, -1), 1, cp)
    w2_p = pad2(params["w2"], cp, cp)
    b2_p = pad2(params["b2"].reshape(1, -1), 1, cp)

    kernel = partial(_encoder_kernel, alpha=float(alpha), beta=float(beta), tv=tv)

    def whole(shape):
        return pl.BlockSpec(shape, lambda p, t: (0, 0))

    grid_spec = pltpu.PrefetchScalarGridSpec(
        num_scalar_prefetch=0,
        grid=(2, n_t),                      # (phase, dst tile); phase is the outer loop
        in_specs=[
            whole((v_pad, 1)),              # deg_out
            whole((v_pad, 1)),              # deg_in
            whole((v_pad, cp)),             # x
            whole((cp, cp)),                # w1
            whole((1, cp)),                 # b1
            whole((cp, cp)),                # w2
            whole((1, cp)),                 # b2
            # A row tiles for layer 1; frozen at the last-visited block during phase 1
            # so the phase transition causes no extra DMA.
            pl.BlockSpec((tv, v_pad), lambda p, t: (t * (1 - p) + (n_t - 1) * p, 0)),
            # A^T row tiles for layer 2; frozen at block 0 during phase 0 (free prefetch
            # of the first block needed in phase 1).
            pl.BlockSpec((tv, v_pad), lambda p, t: (t * p, 0)),
        ],
        out_specs=pl.BlockSpec((tv, cp), lambda p, t: (t * p, 0)),
        scratch_shapes=[
            pltpu.VMEM((v_pad, cp), jnp.bfloat16),   # g: scaled linear features (bf16 MXU operand)
            pltpu.VMEM((v_pad, cp), jnp.float32),    # h: relu(conv1 output)
        ],
    )

    # Rough VMEM need (double-buffered A tiles + resident feature slabs); clamp to a
    # limit safe on all generations (v7x has only 64 MiB physical VMEM per core).
    est = (2 * 2 * tv * v_pad * 2            # A1 + A2 row tiles, double buffered, bf16
           + 2 * v_pad * cp * 4              # x (double buffered)
           + v_pad * cp * (2 + 4)            # g + h scratches
           + 4 * cp * cp * 4                 # weights
           + 2 * tv * cp * 4                 # output tile
           + 4 * v_pad * 128 * 4)            # degree vectors (lane-padded)
    vmem_limit = int(max(32 * 1024 * 1024, min(56 * 1024 * 1024, 2 * est)))

    flops = 2 * 2 * v_pad * v_pad * cp + 2 * 2 * v_pad * cp * cp
    bytes_accessed = 2 * v_pad * v_pad * 2 + 2 * v_pad * cp * 4 + 2 * cp * cp * 4

    out = pl.pallas_call(
        kernel,
        out_shape=jax.ShapeDtypeStruct((v_pad, cp), jnp.float32),
        grid_spec=grid_spec,
        compiler_params=pltpu.CompilerParams(
            # phases (and the per-phase full-linear step) must run sequentially on one core
            dimension_semantics=("arbitrary", "arbitrary"),
            vmem_limit_bytes=vmem_limit,
        ),
        cost_estimate=pl.CostEstimate(flops=flops, transcendentals=2 * v_pad,
                                      bytes_accessed=bytes_accessed),
    )(deg_out, deg_in, x_p, w1_p, b1_p, w2_p, b2_p, a1, a2)

    return out[:v, :c_out]


def _reference_encoder(x, edge_index, params, *, alpha=1.0, beta=0.0, self_loops=True):
    """Pure-JAX mirror of the PyTorch module (edge-list scatter formulation)."""
    v = x.shape[0]

    def conv(h_in, ei, w, b):
        src, dst = ei[0], ei[1]
        if self_loops:
            loop = jnp.arange(v)
            src = jnp.concatenate([src, loop])
            dst = jnp.concatenate([dst, loop])
        h = h_in @ w + b
        deg_out = jnp.zeros((v,), jnp.float32).at[src].add(1.0)
        deg_in = jnp.zeros((v,), jnp.float32).at[dst].add(1.0)
        f_out = jnp.where(deg_out > 0, deg_out ** (-alpha), 0.0)
        f_in = jnp.where(deg_in > 0, deg_in ** (-beta), 0.0)
        norm = f_out[src] * f_in[dst]
        return jnp.zeros((v, w.shape[1]), jnp.float32).at[dst].add(norm[:, None] * h[src])

    h = jax.nn.relu(conv(x, edge_index, params["w1"], params["b1"]))
    return conv(h, edge_index[::-1], params["w2"], params["b2"])


if __name__ == "__main__":
    key = jax.random.PRNGKey(0)
    k_x, k_e1, k_e2, k_w1, k_b1, k_w2, k_b2 = jax.random.split(key, 7)

    # Small, but large enough (200 > 128) to exercise the multi-tile / phase logic.
    num_nodes, num_edges = 200, 512
    in_channels, hidden_channels, out_channels = 8, 32, 16

    x = jax.random.normal(k_x, (num_nodes, in_channels), dtype=jnp.float32)
    src = jax.random.randint(k_e1, (num_edges,), 0, num_nodes)
    dst = jax.random.randint(k_e2, (num_edges,), 0, num_nodes)
    edge_index = jnp.stack([src, dst], axis=0)  # [2, E]

    params = {
        "w1": 0.1 * jax.random.normal(k_w1, (in_channels, hidden_channels), dtype=jnp.float32),
        "b1": 0.1 * jax.random.normal(k_b1, (1, hidden_channels), dtype=jnp.float32),
        "w2": 0.1 * jax.random.normal(k_w2, (hidden_channels, out_channels), dtype=jnp.float32),
        "b2": 0.1 * jax.random.normal(k_b2, (1, out_channels), dtype=jnp.float32),
    }

    out = source_gcn_conv_encoder(x, edge_index, params, alpha=1.0, beta=0.0, self_loops=True)
    out = jax.block_until_ready(out)

    assert out.shape == (num_nodes, out_channels)
    assert bool(jnp.all(jnp.isfinite(out)))

    ref = _reference_encoder(x, edge_index, params, alpha=1.0, beta=0.0, self_loops=True)
    max_err = float(jnp.max(jnp.abs(out - ref)))
    assert max_err < 2e-2, f"max abs error vs reference: {max_err}"

    print("KERNEL_OK")
</pallas_src>

<mosaic_0001>
module attributes {stable_mosaic.version = 11 : i64} {
  func.func @_encoder_kernel(%arg0: i32, %arg1: i32, %arg2: memref<256x1xf32, #tpu.memory_space<vmem>>, %arg3: memref<256x1xf32, #tpu.memory_space<vmem>>, %arg4: memref<256x128xf32, #tpu.memory_space<vmem>>, %arg5: memref<128x128xf32, #tpu.memory_space<vmem>>, %arg6: memref<1x128xf32, #tpu.memory_space<vmem>>, %arg7: memref<128x128xf32, #tpu.memory_space<vmem>>, %arg8: memref<1x128xf32, #tpu.memory_space<vmem>>, %arg9: memref<128x256xbf16, #tpu.memory_space<vmem>>, %arg10: memref<128x256xbf16, #tpu.memory_space<vmem>>, %arg11: memref<128x128xf32, #tpu.memory_space<vmem>>, %arg12: memref<256x128xbf16, #tpu.memory_space<vmem>>, %arg13: memref<256x128xf32, #tpu.memory_space<vmem>>) attributes {dimension_semantics = [#tpu.dimension_semantics<arbitrary>, #tpu.dimension_semantics<arbitrary>], iteration_bounds = array<i64: 2, 2>, scalar_prefetch = 0 : i64, scratch_operands = 2 : i64, tpu.core_type = #tpu.core_type<tc>, window_params = [{pipeline_mode = #tpu.pipeline_mode<synchronous>, transform_indices = @transform_0, window_bounds = array<i64: 256, 1>}, {pipeline_mode = #tpu.pipeline_mode<synchronous>, transform_indices = @transform_1, window_bounds = array<i64: 256, 1>}, {pipeline_mode = #tpu.pipeline_mode<synchronous>, transform_indices = @transform_2, window_bounds = array<i64: 256, 128>}, {pipeline_mode = #tpu.pipeline_mode<synchronous>, transform_indices = @transform_3, window_bounds = array<i64: 128, 128>}, {pipeline_mode = #tpu.pipeline_mode<synchronous>, transform_indices = @transform_4, window_bounds = array<i64: 1, 128>}, {pipeline_mode = #tpu.pipeline_mode<synchronous>, transform_indices = @transform_5, window_bounds = array<i64: 128, 128>}, {pipeline_mode = #tpu.pipeline_mode<synchronous>, transform_indices = @transform_6, window_bounds = array<i64: 1, 128>}, {transform_indices = @transform_7, window_bounds = array<i64: 128, 256>}, {transform_indices = @transform_8, window_bounds = array<i64: 128, 256>}, {transform_indices = @transform_9, window_bounds = array<i64: 128, 128>}]} {
    %c128_i32 = arith.constant 128 : i32
    %0 = arith.muli %arg1, %c128_i32 : i32
    %1 = tpu.assume_multiple %0, 128 : i32
    %c0_i32 = arith.constant 0 : i32
    %2 = arith.cmpi eq, %arg0, %c0_i32 : i32
    %c0_i32_0 = arith.constant 0 : i32
    %3 = arith.cmpi eq, %arg1, %c0_i32_0 : i32
    %4 = arith.andi %2, %3 : i1
    %5 = arith.extui %4 : i1 to i32
    %c0_i32_1 = arith.constant 0 : i32
    %6 = arith.cmpi ne, %5, %c0_i32_1 : i32
    scf.if %6 {
      %c0 = arith.constant 0 : index
      %c0_8 = arith.constant 0 : index
      %18 = vector.load %arg4[%c0, %c0_8] : memref<256x128xf32, #tpu.memory_space<vmem>>, vector<256x128xf32>
      %c0_9 = arith.constant 0 : index
      %c0_10 = arith.constant 0 : index
      %19 = vector.load %arg5[%c0_9, %c0_10] : memref<128x128xf32, #tpu.memory_space<vmem>>, vector<128x128xf32>
      %cst = arith.constant dense<0.000000e+00> : vector<256x128xf32>
      %20 = tpu.matmul %18, %19, %cst {dimension_numbers = #tpu.dot_dimension_numbers<[1], [0], [0], [1], [0, 0, 1, 1], [], []>} : vector<256x128xf32>, vector<128x128xf32>, vector<256x128xf32> -> vector<256x128xf32>
      %c0_11 = arith.constant 0 : index
      %c0_12 = arith.constant 0 : index
      %21 = vector.load %arg6[%c0_11, %c0_12] : memref<1x128xf32, #tpu.memory_space<vmem>>, vector<1x128xf32>
      %22 = vector.broadcast %21 : vector<1x128xf32> to vector<256x128xf32>
      %23 = arith.addf %20, %22 : vector<256x128xf32>
      %c0_13 = arith.constant 0 : index
      %c0_14 = arith.constant 0 : index
      %24 = vector.load %arg2[%c0_13, %c0_14] : memref<256x1xf32, #tpu.memory_space<vmem>>, vector<256x1xf32>
      %cst_15 = arith.constant 0.000000e+00 : f32
      %25 = vector.broadcast %cst_15 : f32 to vector<256x1xf32>
      %26 = arith.cmpf ogt, %24, %25 : vector<256x1xf32>
      %cst_16 = arith.constant 1.000000e+00 : f32
      %27 = vector.broadcast %cst_16 : f32 to vector<256x1xf32>
      %28 = arith.select %26, %24, %27 : vector<256x1xi1>, vector<256x1xf32>
      %29 = tpu.reciprocal %28 {approx = true} : vector<256x1xf32> -> vector<256x1xf32>
      %cst_17 = arith.constant 0.000000e+00 : f32
      %30 = vector.broadcast %cst_17 : f32 to vector<256x1xf32>
      %31 = arith.cmpf ogt, %24, %30 : vector<256x1xf32>
      %cst_18 = arith.constant 0.000000e+00 : f32
      %32 = vector.broadcast %cst_18 : f32 to vector<256x1xf32>
      %33 = arith.select %31, %29, %32 : vector<256x1xi1>, vector<256x1xf32>
      %34 = vector.broadcast %33 : vector<256x1xf32> to vector<256x128xf32>
      %35 = arith.mulf %23, %34 : vector<256x128xf32>
      %36 = arith.truncf %35 : vector<256x128xf32> to vector<256x128xbf16>
      %c0_19 = arith.constant 0 : index
      %c0_20 = arith.constant 0 : index
      %37 = vector.load %arg12[%c0_19, %c0_20] : memref<256x128xbf16, #tpu.memory_space<vmem>>, vector<256x128xbf16>
      tpu.vector_store %arg12[%c0_19, %c0_20], %36 {strides = array<i32>} : memref<256x128xbf16, #tpu.memory_space<vmem>>, vector<256x128xbf16>,
    } else {
    }
    %c0_i32_2 = arith.constant 0 : i32
    %7 = arith.cmpi eq, %arg0, %c0_i32_2 : i32
    %8 = arith.extui %7 : i1 to i32
    %c0_i32_3 = arith.constant 0 : i32
    %9 = arith.cmpi ne, %8, %c0_i32_3 : i32
    scf.if %9 {
      %c0 = arith.constant 0 : index
      %c0_8 = arith.constant 0 : index
      %18 = vector.load %arg9[%c0, %c0_8] : memref<128x256xbf16, #tpu.memory_space<vmem>>, vector<128x256xbf16>
      %c0_9 = arith.constant 0 : index
      %c0_10 = arith.constant 0 : index
      %19 = vector.load %arg12[%c0_9, %c0_10] : memref<256x128xbf16, #tpu.memory_space<vmem>>, vector<256x128xbf16>
      %cst = arith.constant dense<0.000000e+00> : vector<128x128xf32>
      %20 = tpu.matmul %18, %19, %cst {dimension_numbers = #tpu.dot_dimension_numbers<[1], [0], [0], [1], [0, 0, 1, 1], [], []>} : vector<128x256xbf16>, vector<256x128xbf16>, vector<128x128xf32> -> vector<128x128xf32>
      %cst_11 = arith.constant 0.000000e+00 : f32
      %21 = vector.broadcast %cst_11 : f32 to vector<128x128xf32>
      %22 = arith.maximumf %20, %21 : vector<128x128xf32>
      %23 = arith.index_cast %1 : i32 to index
      %c0_12 = arith.constant 0 : index
      %24 = vector.load %arg13[%23, %c0_12] : memref<256x128xf32, #tpu.memory_space<vmem>>, vector<128x128xf32>
      tpu.vector_store %arg13[%23, %c0_12], %22 {strides = array<i32>} : memref<256x128xf32, #tpu.memory_space<vmem>>, vector<128x128xf32>,
    } else {
    }
    %c1_i32 = arith.constant 1 : i32
    %10 = arith.cmpi eq, %arg0, %c1_i32 : i32
    %c0_i32_4 = arith.constant 0 : i32
    %11 = arith.cmpi eq, %arg1, %c0_i32_4 : i32
    %12 = arith.andi %10, %11 : i1
    %13 = arith.extui %12 : i1 to i32
    %c0_i32_5 = arith.constant 0 : i32
    %14 = arith.cmpi ne, %13, %c0_i32_5 : i32
    scf.if %14 {
      %c0 = arith.constant 0 : index
      %c0_8 = arith.constant 0 : index
      %18 = vector.load %arg13[%c0, %c0_8] : memref<256x128xf32, #tpu.memory_space<vmem>>, vector<256x128xf32>
      %c0_9 = arith.constant 0 : index
      %c0_10 = arith.constant 0 : index
      %19 = vector.load %arg7[%c0_9, %c0_10] : memref<128x128xf32, #tpu.memory_space<vmem>>, vector<128x128xf32>
      %cst = arith.constant dense<0.000000e+00> : vector<256x128xf32>
      %20 = tpu.matmul %18, %19, %cst {dimension_numbers = #tpu.dot_dimension_numbers<[1], [0], [0], [1], [0, 0, 1, 1], [], []>} : vector<256x128xf32>, vector<128x128xf32>, vector<256x128xf32> -> vector<256x128xf32>
      %c0_11 = arith.constant 0 : index
      %c0_12 = arith.constant 0 : index
      %21 = vector.load %arg8[%c0_11, %c0_12] : memref<1x128xf32, #tpu.memory_space<vmem>>, vector<1x128xf32>
      %22 = vector.broadcast %21 : vector<1x128xf32> to vector<256x128xf32>
      %23 = arith.addf %20, %22 : vector<256x128xf32>
      %c0_13 = arith.constant 0 : index
      %c0_14 = arith.constant 0 : index
      %24 = vector.load %arg3[%c0_13, %c0_14] : memref<256x1xf32, #tpu.memory_space<vmem>>, vector<256x1xf32>
      %cst_15 = arith.constant 0.000000e+00 : f32
      %25 = vector.broadcast %cst_15 : f32 to vector<256x1xf32>
      %26 = arith.cmpf ogt, %24, %25 : vector<256x1xf32>
      %cst_16 = arith.constant 1.000000e+00 : f32
      %27 = vector.broadcast %cst_16 : f32 to vector<256x1xf32>
      %28 = arith.select %26, %24, %27 : vector<256x1xi1>, vector<256x1xf32>
      %29 = tpu.reciprocal %28 {approx = true} : vector<256x1xf32> -> vector<256x1xf32>
      %cst_17 = arith.constant 0.000000e+00 : f32
      %30 = vector.broadcast %cst_17 : f32 to vector<256x1xf32>
      %31 = arith.cmpf ogt, %24, %30 : vector<256x1xf32>
      %cst_18 = arith.constant 0.000000e+00 : f32
      %32 = vector.broadcast %cst_18 : f32 to vector<256x1xf32>
      %33 = arith.select %31, %29, %32 : vector<256x1xi1>, vector<256x1xf32>
      %34 = vector.broadcast %33 : vector<256x1xf32> to vector<256x128xf32>
      %35 = arith.mulf %23, %34 : vector<256x128xf32>
      %36 = arith.truncf %35 : vector<256x128xf32> to vector<256x128xbf16>
      %c0_19 = arith.constant 0 : index
      %c0_20 = arith.constant 0 : index
      %37 = vector.load %arg12[%c0_19, %c0_20] : memref<256x128xbf16, #tpu.memory_space<vmem>>, vector<256x128xbf16>
      tpu.vector_store %arg12[%c0_19, %c0_20], %36 {strides = array<i32>} : memref<256x128xbf16, #tpu.memory_space<vmem>>, vector<256x128xbf16>,
    } else {
    }
    %c1_i32_6 = arith.constant 1 : i32
    %15 = arith.cmpi eq, %arg0, %c1_i32_6 : i32
    %16 = arith.extui %15 : i1 to i32
    %c0_i32_7 = arith.constant 0 : i32
    %17 = arith.cmpi ne, %16, %c0_i32_7 : i32
    scf.if %17 {
      %c0 = arith.constant 0 : index
      %c0_8 = arith.constant 0 : index
      %18 = vector.load %arg10[%c0, %c0_8] : memref<128x256xbf16, #tpu.memory_space<vmem>>, vector<128x256xbf16>
      %c0_9 = arith.constant 0 : index
      %c0_10 = arith.constant 0 : index
      %19 = vector.load %arg12[%c0_9, %c0_10] : memref<256x128xbf16, #tpu.memory_space<vmem>>, vector<256x128xbf16>
      %cst = arith.constant dense<0.000000e+00> : vector<128x128xf32>
      %20 = tpu.matmul %18, %19, %cst {dimension_numbers = #tpu.dot_dimension_numbers<[1], [0], [0], [1], [0, 0, 1, 1], [], []>} : vector<128x256xbf16>, vector<256x128xbf16>, vector<128x128xf32> -> vector<128x128xf32>
      %c0_11 = arith.constant 0 : index
      %c0_12 = arith.constant 0 : index
      %21 = vector.load %arg11[%c0_11, %c0_12] : memref<128x128xf32, #tpu.memory_space<vmem>>, vector<128x128xf32>
      tpu.vector_store %arg11[%c0_11, %c0_12], %20 {strides = array<i32>} : memref<128x128xf32, #tpu.memory_space<vmem>>, vector<128x128xf32>,
    } else {
    }
    return
  }
  func.func @transform_0(%arg0: i32, %arg1: i32) -> (i32, i32) {
    %c0_i32 = arith.constant 0 : i32
    %c0_i32_0 = arith.constant 0 : i32
    %c0_i32_1 = arith.constant 0 : i32
    return %c0_i32, %c0_i32_0 : i32, i32
  }
  func.func @transform_1(%arg0: i32, %arg1: i32) -> (i32, i32) {
    %c0_i32 = arith.constant 0 : i32
    %c0_i32_0 = arith.constant 0 : i32
    %c0_i32_1 = arith.constant 0 : i32
    return %c0_i32, %c0_i32_0 : i32, i32
  }
  func.func @transform_2(%arg0: i32, %arg1: i32) -> (i32, i32) {
    %c0_i32 = arith.constant 0 : i32
    %c0_i32_0 = arith.constant 0 : i32
    %c0_i32_1 = arith.constant 0 : i32
    return %c0_i32, %c0_i32_0 : i32, i32
  }
  func.func @transform_3(%arg0: i32, %arg1: i32) -> (i32, i32) {
    %c0_i32 = arith.constant 0 : i32
    %c0_i32_0 = arith.constant 0 : i32
    %c0_i32_1 = arith.constant 0 : i32
    return %c0_i32, %c0_i32_0 : i32, i32
  }
  func.func @transform_4(%arg0: i32, %arg1: i32) -> (i32, i32) {
    %c0_i32 = arith.constant 0 : i32
    %c0_i32_0 = arith.constant 0 : i32
    %c0_i32_1 = arith.constant 0 : i32
    return %c0_i32, %c0_i32_0 : i32, i32
  }
  func.func @transform_5(%arg0: i32, %arg1: i32) -> (i32, i32) {
    %c0_i32 = arith.constant 0 : i32
    %c0_i32_0 = arith.constant 0 : i32
    %c0_i32_1 = arith.constant 0 : i32
    return %c0_i32, %c0_i32_0 : i32, i32
  }
  func.func @transform_6(%arg0: i32, %arg1: i32) -> (i32, i32) {
    %c0_i32 = arith.constant 0 : i32
    %c0_i32_0 = arith.constant 0 : i32
    %c0_i32_1 = arith.constant 0 : i32
    return %c0_i32, %c0_i32_0 : i32, i32
  }
  func.func @transform_7(%arg0: i32, %arg1: i32) -> (i32, i32) {
    %c1_i32 = arith.constant 1 : i32
    %0 = arith.subi %c1_i32, %arg0 : i32
    %1 = arith.muli %arg1, %0 : i32
    %c1_i32_0 = arith.constant 1 : i32
    %2 = arith.muli %c1_i32_0, %arg0 : i32
    %3 = arith.addi %1, %2 : i32
    %c0_i32 = arith.constant 0 : i32
    %c0_i32_1 = arith.constant 0 : i32
    return %3, %c0_i32 : i32, i32
  }
  func.func @transform_8(%arg0: i32, %arg1: i32) -> (i32, i32) {
    %0 = arith.muli %arg1, %arg0 : i32
    %c0_i32 = arith.constant 0 : i32
    %c0_i32_0 = arith.constant 0 : i32
    return %0, %c0_i32 : i32, i32
  }
  func.func @transform_9(%arg0: i32, %arg1: i32) -> (i32, i32) {
    %0 = arith.muli %arg1, %arg0 : i32
    %c0_i32 = arith.constant 0 : i32
    %c0_i32_0 = arith.constant 0 : i32
    return %0, %c0_i32 : i32, i32
  }
}

</mosaic_0001>

<llo_original>
// kernel: tpu_custom_call.1
$region0: #{tpu_custom_call.1}
  #allocation0 [shape = 'u32[]', space=smem, size = 0x4, offset = 0x4, fixed_abs, tag = 'smem constant byte address 0x4 - core index']
  #allocation1 [shape = 'u32[72,128]{1,0:T(1,128)}', space=vmem, size = 0x9000, scoped, tag = 'internal scratch']
  #allocation2 [shape = 'bf16[256,128]{1,0:T(8,128)(2,1)}', space=vmem, size = 0x10000, scoped, tag = 'scratch operand']
  #allocation3 [shape = 'f32[256,128]{1,0:T(8,128)}', space=vmem, size = 0x20000, scoped, tag = 'scratch operand']
  %s0 = inlined_call_operand.vmem [shape: f32[256,1], index: 0, kind: input, shape index: {}]
  %s1 = inlined_call_operand.vmem [shape: f32[256,1], index: 1, kind: input, shape index: {}]
  %s2 = inlined_call_operand.vmem [shape: f32[256,128], index: 2, kind: input, shape index: {}]
  %s3 = inlined_call_operand.hbm [shape: f32[128,128], index: 3, kind: input, shape index: {}]
  %s4 = inlined_call_operand.vmem [shape: f32[1,128], index: 4, kind: input, shape index: {}]
  %s5 = inlined_call_operand.hbm [shape: f32[128,128], index: 5, kind: input, shape index: {}]
  %s6 = inlined_call_operand.vmem [shape: f32[1,128], index: 6, kind: input, shape index: {}]
  %s7 = inlined_call_operand.vmem [shape: bf16[256,256], index: 7, kind: input, shape index: {}]
  %s8 = inlined_call_operand.hbm [shape: bf16[256,256], index: 8, kind: input, shape index: {}]
  %s9 = inlined_call_operand.hbm [shape: f32[256,128], index: 9, kind: output, shape index: {}]
  %s10 = sld [smem:[#allocation0]]
  $region97: #{tpu_custom_call.1} parent=0
    _
  %s12 = ssub.s32 1, %s10
  %s13 = scalar_select 0, %s12, %s10
  $region1: #{tpu_custom_call.1} parent=0
    #allocation4 [shape = 'u8[65536]{0}', space=vmem, size = 0x10000, scoped, tag = 'input window, operand 3, single buffered']
    #allocation5 [shape = 's32[2]{0}', space=sflag, size = 0x8, scoped, tag = 'scoped memory for tpu_custom_call.1']
    #allocation6 [shape = 's32[2]{0}', space=sflag, size = 0x8, scoped, tag = 'scoped memory for tpu_custom_call.1']
    #allocation7 [shape = 'u8[65536]{0}', space=vmem, size = 0x10000, scoped, tag = 'input window, operand 5, single buffered']
    #allocation8 [shape = 's32[1]{0}', space=sflag, size = 0x4, scoped, tag = 'scoped memory for tpu_custom_call.1']
    #allocation9 [shape = 'u8[131072]{0}', space=vmem, size = 0x20000, scoped, tag = 'input window, operand 8']
    #allocation10 [shape = 'u8[131072]{0}', space=vmem, size = 0x20000, scoped, tag = 'output window, operand 0']
    %14 = vsyncpa [#allocation5], 0
    %15 = vsyncpa [#allocation8], 0
    %16 = vsyncpa [#allocation6], 0
    %s17 = scalar_lea.sflag [#allocation6], 1
    %18 = vsyncpa %s17, 0
    loop: start=0, step=1, limit=6
    $region2: #{tpu_custom_call.1} parent=1 // loop_pre_header
      _
    $region3: #{tpu_custom_call.1} parent=1 // loop_header
      %s20 = sphi 0, %s24
      %p21 = scmp.ge.s32.totalorder %s20, 6
      %s27 = sphi 0, %s39
      %s28 = sphi 0, %s35
      %s29 = sphi 0, %s27
      %s30 = sphi 0, %s28
      %s31 = sphi 0, %s29
      %s32 = sphi 0, %s30
      %s40 = sphi 0, %s40
      %s42 = sphi 0, %s40
      %s43 = sphi 0, %s42
      %s57 = sphi 0, %s43
      %s61 = sphi 0, %s61
      %s63 = sphi 0, %s61
      %s64 = sphi 0, %s63
      %s78 = sphi 0, %s64
      %s82 = sphi 0, %s82
      %s84 = sphi 0, %s82
      %s85 = sphi 0, %s84
      %s99 = sphi 0, %s85
      %s103 = sphi 0, %s103
      %s105 = sphi 0, %s103
      %s106 = sphi 0, %s105
      %s120 = sphi 0, %s106
      %s124 = sphi 0, %s124
      %s126 = sphi 0, %s124
      %s127 = sphi 0, %s126
      %s141 = sphi 0, %s127
      %s145 = sphi 0, %s145
      %s147 = sphi 0, %s145
      %s148 = sphi 0, %s147
      %s162 = sphi 0, %s148
      %s166 = sphi 0, %s166
      %s168 = sphi 0, %s166
      %s169 = sphi 0, %s168
      %s183 = sphi 0, %s169
      %s195 = sphi 0, %s197
      %s198 = sphi 0, %s195
      %s199 = sphi 0, %s198
      %s215 = sphi 0, %s199
      %s223 = sphi 0, %s225
      %s226 = sphi 0, %s223
      %s227 = sphi 0, %s226
      %s243 = sphi 0, %s227
      %s251 = sphi 0, %s253
      %s254 = sphi 0, %s251
      %s255 = sphi 0, %s254
      %s271 = sphi 0, %s255
    $region4: #{tpu_custom_call.1} parent=1 // loop_header_branch
      %23 = sbr.rel (%p21) target = $region8
    $region5: #{tpu_custom_call.1} parent=1 // loop_body
      %s25 = ssub.s32 %s20, 1
      %s26 = ssub.s32 %s20, 2
      %s33 = sadd.s32 1, %s28
      %p34 = scmp.ge.s32.totalorder %s33, 2
      %s35 = scalar_select %p34, 0, %s33
      %s36 = sadd.s32 1, %s27
      %s37 = scalar_select %p34, %s36, %s27
      %p38 = scmp.ge.s32.totalorder %s37, 2
      %s39 = scalar_select %p38, 0, %s37
      %s41 = sadd.s32 %s40, 1
      %p44 = scmp.eq.s32.totalorder %s20, 3
      %p45 = scmp.ne.s32.totalorder %s40, %s42
      %p46 = scmp.eq.s32.totalorder %s20, 0
      %p47 = por %p45, %p46
      %p48 = scmp.ne.s32.totalorder %s40, %s42
      %p49 = scmp.eq.s32.totalorder %s25, 3
      %p50 = por %p48, %p49
      %p51 = scmp.ne.s32.totalorder %s42, %s43
      %p52 = scmp.eq.s32.totalorder %s25, 0
      %p53 = por %p51, %p52
      %p54 = scmp.ne.s32.totalorder %s42, %s43
      %p55 = scmp.eq.s32.totalorder %s26, 3
      %p56 = por %p54, %p55
      %p58 = scmp.ne.s32.totalorder %s43, %s57
      %p59 = scmp.eq.s32.totalorder %s26, 0
      %p60 = por %p58, %p59
      %s62 = sadd.s32 %s61, 1
      %p65 = scmp.eq.s32.totalorder %s20, 3
      %p66 = scmp.ne.s32.totalorder %s61, %s63
      %p67 = scmp.eq.s32.totalorder %s20, 0
      %p68 = por %p66, %p67
      %p69 = scmp.ne.s32.totalorder %s61, %s63
      %p70 = scmp.eq.s32.totalorder %s25, 3
      %p71 = por %p69, %p70
      %p72 = scmp.ne.s32.totalorder %s63, %s64
      %p73 = scmp.eq.s32.totalorder %s25, 0
      %p74 = por %p72, %p73
      %p75 = scmp.ne.s32.totalorder %s63, %s64
      %p76 = scmp.eq.s32.totalorder %s26, 3
      %p77 = por %p75, %p76
      %p79 = scmp.ne.s32.totalorder %s64, %s78
      %p80 = scmp.eq.s32.totalorder %s26, 0
      %p81 = por %p79, %p80
      %s83 = sadd.s32 %s82, 1
      %p86 = scmp.eq.s32.totalorder %s20, 3
      %p87 = scmp.ne.s32.totalorder %s82, %s84
      %p88 = scmp.eq.s32.totalorder %s20, 0
      %p89 = por %p87, %p88
      %p90 = scmp.ne.s32.totalorder %s82, %s84
      %p91 = scmp.eq.s32.totalorder %s25, 3
      %p92 = por %p90, %p91
      %p93 = scmp.ne.s32.totalorder %s84, %s85
      %p94 = scmp.eq.s32.totalorder %s25, 0
      %p95 = por %p93, %p94
      %p96 = scmp.ne.s32.totalorder %s84, %s85
      %p97 = scmp.eq.s32.totalorder %s26, 3
      %p98 = por %p96, %p97
      %p100 = scmp.ne.s32.totalorder %s85, %s99
      %p101 = scmp.eq.s32.totalorder %s26, 0
      %p102 = por %p100, %p101
      %s104 = sadd.s32 %s103, 1
      %p107 = scmp.eq.s32.totalorder %s20, 3
      %p108 = scmp.ne.s32.totalorder %s103, %s105
      %p109 = scmp.eq.s32.totalorder %s20, 0
      %p110 = por %p108, %p109
      %p111 = scmp.ne.s32.totalorder %s103, %s105
      %p112 = scmp.eq.s32.totalorder %s25, 3
      %p113 = por %p111, %p112
      %p114 = scmp.ne.s32.totalorder %s105, %s106
      %p115 = scmp.eq.s32.totalorder %s25, 0
      %p116 = por %p114, %p115
      %p117 = scmp.ne.s32.totalorder %s105, %s106
      %p118 = scmp.eq.s32.totalorder %s26, 3
      %p119 = por %p117, %p118
      %p121 = scmp.ne.s32.totalorder %s106, %s120
      %p122 = scmp.eq.s32.totalorder %s26, 0
      %p123 = por %p121, %p122
      %s125 = sadd.s32 %s124, 1
      %p128 = scmp.eq.s32.totalorder %s20, 3
      %p129 = scmp.ne.s32.totalorder %s124, %s126
      %p130 = scmp.eq.s32.totalorder %s20, 0
      %p131 = por %p129, %p130
      %p132 = scmp.ne.s32.totalorder %s124, %s126
      %p133 = scmp.eq.s32.totalorder %s25, 3
      %p134 = por %p132, %p133
      %p135 = scmp.ne.s32.totalorder %s126, %s127
      %p136 = scmp.eq.s32.totalorder %s25, 0
      %p137 = por %p135, %p136
      %p138 = scmp.ne.s32.totalorder %s126, %s127
      %p139 = scmp.eq.s32.totalorder %s26, 3
      %p140 = por %p138, %p139
      %p142 = scmp.ne.s32.totalorder %s127, %s141
      %p143 = scmp.eq.s32.totalorder %s26, 0
      %p144 = por %p142, %p143
      %s146 = sadd.s32 %s145, 1
      %p149 = scmp.eq.s32.totalorder %s20, 3
      %p150 = scmp.ne.s32.totalorder %s145, %s147
      %p151 = scmp.eq.s32.totalorder %s20, 0
      %p152 = por %p150, %p151
      %p153 = scmp.ne.s32.totalorder %s145, %s147
      %p154 = scmp.eq.s32.totalorder %s25, 3
      %p155 = por %p153, %p154
      %p156 = scmp.ne.s32.totalorder %s147, %s148
      %p157 = scmp.eq.s32.totalorder %s25, 0
      %p158 = por %p156, %p157
      %p159 = scmp.ne.s32.totalorder %s147, %s148
      %p160 = scmp.eq.s32.totalorder %s26, 3
      %p161 = por %p159, %p160
      %p163 = scmp.ne.s32.totalorder %s148, %s162
      %p164 = scmp.eq.s32.totalorder %s26, 0
      %p165 = por %p163, %p164
      %s167 = sadd.s32 %s166, 1
      %p170 = scmp.eq.s32.totalorder %s20, 3
      %p171 = scmp.ne.s32.totalorder %s166, %s168
      %p172 = scmp.eq.s32.totalorder %s20, 0
      %p173 = por %p171, %p172
      %p174 = scmp.ne.s32.totalorder %s166, %s168
      %p175 = scmp.eq.s32.totalorder %s25, 3
      %p176 = por %p174, %p175
      %p177 = scmp.ne.s32.totalorder %s168, %s169
      %p178 = scmp.eq.s32.totalorder %s25, 0
      %p179 = por %p177, %p178
      %p180 = scmp.ne.s32.totalorder %s168, %s169
      %p181 = scmp.eq.s32.totalorder %s26, 3
      %p182 = por %p180, %p181
      %p184 = scmp.ne.s32.totalorder %s169, %s183
      %p185 = scmp.eq.s32.totalorder %s26, 0
      %p186 = por %p184, %p185
      %s187 = ssub.s32 1, %s27
      %s188 = smul.u32 %s28, %s187
      %s189 = sadd.s32 %s188, %s27
      %s190 = ssub.s32 1, %s39
      %s191 = smul.u32 %s35, %s190
      %s192 = sadd.s32 %s191, %s39
      %s193 = ssub.s32 %s189, %s192
      %p194 = scmp.eq.s32.totalorder %s193, 0
      %s196 = sadd.s32 %s195, 1
      %s197 = scalar_select %p194, %s195, %s196
      %p200 = pneg %p194
      %p201 = scmp.eq.s32.totalorder %s20, 3
      %p202 = por %p200, %p201
      %p203 = scmp.ne.s32.totalorder %s195, %s198
      %p204 = scmp.eq.s32.totalorder %s20, 0
      %p205 = por %p203, %p204
      %p206 = scmp.ne.s32.totalorder %s195, %s198
      %p207 = scmp.eq.s32.totalorder %s25, 3
      %p208 = por %p206, %p207
      %p209 = scmp.ne.s32.totalorder %s198, %s199
      %p210 = scmp.eq.s32.totalorder %s25, 0
      %p211 = por %p209, %p210
      %p212 = scmp.ne.s32.totalorder %s198, %s199
      %p213 = scmp.eq.s32.totalorder %s26, 3
      %p214 = por %p212, %p213
      %p216 = scmp.ne.s32.totalorder %s199, %s215
      %p217 = scmp.eq.s32.totalorder %s26, 0
      %p218 = por %p216, %p217
      %s219 = smul.u32 %s28, %s27
      %s220 = smul.u32 %s35, %s39
      %s221 = ssub.s32 %s219, %s220
      %p222 = scmp.eq.s32.totalorder %s221, 0
      %s224 = sadd.s32 %s223, 1
      %s225 = scalar_select %p222, %s223, %s224
      %p228 = pneg %p222
      %p229 = scmp.eq.s32.totalorder %s20, 3
      %p230 = por %p228, %p229
      %p231 = scmp.ne.s32.totalorder %s223, %s226
      %p232 = scmp.eq.s32.totalorder %s20, 0
      %p233 = por %p231, %p232
      %p234 = scmp.ne.s32.totalorder %s223, %s226
      %p235 = scmp.eq.s32.totalorder %s25, 3
      %p236 = por %p234, %p235
      %p237 = scmp.ne.s32.totalorder %s226, %s227
      %p238 = scmp.eq.s32.totalorder %s25, 0
      %p239 = por %p237, %p238
      %p240 = scmp.ne.s32.totalorder %s226, %s227
      %p241 = scmp.eq.s32.totalorder %s26, 3
      %p242 = por %p240, %p241
      %p244 = scmp.ne.s32.totalorder %s227, %s243
      %p245 = scmp.eq.s32.totalorder %s26, 0
      %p246 = por %p244, %p245
      %s247 = smul.u32 %s28, %s27
      %s248 = smul.u32 %s35, %s39
      %s249 = ssub.s32 %s247, %s248
      %p250 = scmp.eq.s32.totalorder %s249, 0
      %s252 = sadd.s32 %s251, 1
      %s253 = scalar_select %p250, %s251, %s252
      %p256 = pneg %p250
      %p257 = scmp.eq.s32.totalorder %s20, 3
      %p258 = por %p256, %p257
      %p259 = scmp.ne.s32.totalorder %s251, %s254
      %p260 = scmp.eq.s32.totalorder %s20, 0
      %p261 = por %p259, %p260
      %p262 = scmp.ne.s32.totalorder %s251, %s254
      %p263 = scmp.eq.s32.totalorder %s25, 3
      %p264 = por %p262, %p263
      %p265 = scmp.ne.s32.totalorder %s254, %s255
      %p266 = scmp.eq.s32.totalorder %s25, 0
      %p267 = por %p265, %p266
      %p268 = scmp.ne.s32.totalorder %s254, %s255
      %p269 = scmp.eq.s32.totalorder %s26, 3
      %p270 = por %p268, %p269
      %p272 = scmp.ne.s32.totalorder %s255, %s271
      %p273 = scmp.eq.s32.totalorder %s26, 0
      %p274 = por %p272, %p273
      %p275 = scmp.le.s32.totalorder 1, %s20
      %p276 = scmp.lt.s32.totalorder %s20, 5
      %p277 = pnand %p275, %p276
      %p278 = pneg %p277
      // Predicated region
      $region9: #{tpu_custom_call.1} parent=5 // pred_check
        _
      $region10: #{tpu_custom_call.1} parent=5 // pred_check_branch
        %280 = sbr.rel (%p277) target = $region12
      $region11: #{tpu_custom_call.1} parent=5 // pred_region
        %s281 = ssub.s32 %s20, 1
        // Predicated region
        $region13: #{tpu_custom_call.1} parent=11 // pred_check
          %p282 = pneg %p53
        $region14: #{tpu_custom_call.1} parent=11 // pred_check_branch
          %284 = sbr.rel (%p282) target = $region16
        $region15: #{tpu_custom_call.1} parent=11 // pred_region
          _
        $region16: #{tpu_custom_call.1} parent=11 // pred_fallthru
          _
        // Predicated region
        $region17: #{tpu_custom_call.1} parent=11 // pred_check
          %p285 = pneg %p74
        $region18: #{tpu_custom_call.1} parent=11 // pred_check_branch
          %287 = sbr.rel (%p285) target = $region20
        $region19: #{tpu_custom_call.1} parent=11 // pred_region
          _
        $region20: #{tpu_custom_call.1} parent=11 // pred_fallthru
          _
        // Predicated region
        $region21: #{tpu_custom_call.1} parent=11 // pred_check
          %p288 = pneg %p95
        $region22: #{tpu_custom_call.1} parent=11 // pred_check_branch
          %290 = sbr.rel (%p288) target = $region24
        $region23: #{tpu_custom_call.1} parent=11 // pred_region
          _
        $region24: #{tpu_custom_call.1} parent=11 // pred_fallthru
          _
        // Predicated region
        $region25: #{tpu_custom_call.1} parent=11 // pred_check
          %p291 = pneg %p116
        $region26: #{tpu_custom_call.1} parent=11 // pred_check_branch
          %293 = sbr.rel (%p291) target = $region28
        $region27: #{tpu_custom_call.1} parent=11 // pred_region
          %295 = vsyncadd [#allocation5], 0
          %s296 = sshll.u32 %s3, 4
          %s297 = int_to_ptr.hbm [resolvable:$true] %s296
          %s298 = sshll.u32 [#allocation4], 4
          %s299 = int_to_ptr.vmem [resolvable:$true] %s298
          %304 = dma.hbm_to_vmem [thread:$0]  %s297, 2048, %s299, [#allocation5], 128, 128, 8
        $region28: #{tpu_custom_call.1} parent=11 // pred_fallthru
          _
        // Predicated region
        $region29: #{tpu_custom_call.1} parent=11 // pred_check
          %p305 = pneg %p137
        $region30: #{tpu_custom_call.1} parent=11 // pred_check_branch
          %307 = sbr.rel (%p305) target = $region32
        $region31: #{tpu_custom_call.1} parent=11 // pred_region
          _
        $region32: #{tpu_custom_call.1} parent=11 // pred_fallthru
          _
        // Predicated region
        $region33: #{tpu_custom_call.1} parent=11 // pred_check
          %p308 = pneg %p158
        $region34: #{tpu_custom_call.1} parent=11 // pred_check_branch
          %310 = sbr.rel (%p308) target = $region36
        $region35: #{tpu_custom_call.1} parent=11 // pred_region
          %312 = vsyncadd [#allocation8], 0
          %s313 = sshll.u32 %s5, 4
          %s314 = int_to_ptr.hbm [resolvable:$true] %s313
          %s315 = sshll.u32 [#allocation7], 4
          %s316 = int_to_ptr.vmem [resolvable:$true] %s315
          %321 = dma.hbm_to_vmem [thread:$0]  %s314, 2048, %s316, [#allocation8], 128, 128, 8
        $region36: #{tpu_custom_call.1} parent=11 // pred_fallthru
          _
        // Predicated region
        $region37: #{tpu_custom_call.1} parent=11 // pred_check
          %p322 = pneg %p179
        $region38: #{tpu_custom_call.1} parent=11 // pred_check_branch
          %324 = sbr.rel (%p322) target = $region40
        $region39: #{tpu_custom_call.1} parent=11 // pred_region
          _
        $region40: #{tpu_custom_call.1} parent=11 // pred_fallthru
          _
      $region12: #{tpu_custom_call.1} parent=5 // pred_fallthru
        _
      %p325 = scmp.lt.s32.totalorder %s20, 4
      // Predicated region
      $region41: #{tpu_custom_call.1} parent=5 // pred_check
        %p326 = pneg %p325
      $region42: #{tpu_custom_call.1} parent=5 // pred_check_branch
        %328 = sbr.rel (%p326) target = $region44
      $region43: #{tpu_custom_call.1} parent=5 // pred_region
        // Predicated region
        $region45: #{tpu_custom_call.1} parent=43 // pred_check
          %p329 = pneg %p205
        $region46: #{tpu_custom_call.1} parent=43 // pred_check_branch
          %331 = sbr.rel (%p329) target = $region48
        $region47: #{tpu_custom_call.1} parent=43 // pred_region
          %s332 = ssub.s32 1, %s27
          %s333 = smul.u32 %s28, %s332
          %s334 = sadd.s32 %s333, %s27
          %s335 = smul.u32 16, %s334
          %p336 = scmp.lt.s32.totalorder %s335, 31
          %s337 = scalar_select %p336, %s335, 31
          %s338 = smul.addr %s337, 2
          %s339 = smul.addr %s338, 4
          %s340 = scalar_lea.vmem %s7, %s339
          %s341 = ssub.s32 1, %s27
          %s342 = smul.u32 %s28, %s341
          %s343 = sadd.s32 %s342, %s27
          %s344 = smul.u32 16, %s343
        $region48: #{tpu_custom_call.1} parent=43 // pred_fallthru
          _
        // Predicated region
        $region49: #{tpu_custom_call.1} parent=43 // pred_check
          %p345 = pneg %p233
        $region50: #{tpu_custom_call.1} parent=43 // pred_check_branch
          %347 = sbr.rel (%p345) target = $region52
        $region51: #{tpu_custom_call.1} parent=43 // pred_region
          %s348 = sand.u32 %s20, 1
          %s349 = scalar_lea.sflag [#allocation5], %s348
          %s350 = sand.u32 %s223, 1
          %s351 = smul.addr %s350, 128
          %s352 = scalar_lea.vmem [#allocation9], %s351
          %s353 = smul.u32 %s28, %s27
          %s354 = smul.u32 16, %s353
          %356 = vsyncadd %s349, 0
          %s357 = smul.addr %s354, 2
          %s358 = smul.addr %s357, 4
          %s359 = scalar_lea.hbm %s8, %s358
          %s360 = sshll.u32 %s359, 4
          %s361 = int_to_ptr.hbm [resolvable:$true] %s360
          %s362 = sshll.u32 %s352, 4
          %s363 = int_to_ptr.vmem [resolvable:$true] %s362
          %368 = dma.hbm_to_vmem [thread:$0]  %s361, 2048, %s363, %s349, 128, 128, 8
        $region52: #{tpu_custom_call.1} parent=43 // pred_fallthru
          _
      $region44: #{tpu_custom_call.1} parent=5 // pred_fallthru
        _
      %p369 = scmp.le.s32.totalorder 1, %s20
      %p370 = scmp.lt.s32.totalorder %s20, 5
      %p371 = pnand %p369, %p370
      %p372 = pneg %p371
      // Predicated region
      $region53: #{tpu_custom_call.1} parent=5 // pred_check
        _
      $region54: #{tpu_custom_call.1} parent=5 // pred_check_branch
        %374 = sbr.rel (%p371) target = $region56
      $region55: #{tpu_custom_call.1} parent=5 // pred_region
        %s375 = ssub.s32 %s20, 1
        // Predicated region
        $region57: #{tpu_custom_call.1} parent=55 // pred_check
          %p376 = pneg %p116
        $region58: #{tpu_custom_call.1} parent=55 // pred_check_branch
          %378 = sbr.rel (%p376) target = $region60
        $region59: #{tpu_custom_call.1} parent=55 // pred_region
          %380 = dma.done [#allocation5], 2048
        $region60: #{tpu_custom_call.1} parent=55 // pred_fallthru
          _
        // Predicated region
        $region61: #{tpu_custom_call.1} parent=55 // pred_check
          %p381 = pneg %p158
        $region62: #{tpu_custom_call.1} parent=55 // pred_check_branch
          %383 = sbr.rel (%p381) target = $region64
        $region63: #{tpu_custom_call.1} parent=55 // pred_region
          %385 = dma.done [#allocation8], 2048
        $region64: #{tpu_custom_call.1} parent=55 // pred_fallthru
          _
        %s386 = sand.u32 %s25, 1
        %s387 = scalar_lea.sflag [#allocation5], %s386
        %s388 = sand.u32 %s226, 1
        %s389 = smul.addr %s388, 128
        %s390 = scalar_lea.vmem [#allocation9], %s389
        // Predicated region
        $region65: #{tpu_custom_call.1} parent=55 // pred_check
          %p391 = pneg %p239
        $region66: #{tpu_custom_call.1} parent=55 // pred_check_branch
          %393 = sbr.rel (%p391) target = $region68
        $region67: #{tpu_custom_call.1} parent=55 // pred_region
          %395 = dma.done %s387, 2048
        $region68: #{tpu_custom_call.1} parent=55 // pred_fallthru
          _
        %p396 = pneg %p53
        %p397 = pneg %p50
        %p398 = pneg %p74
        %p399 = pneg %p71
        %p400 = pneg %p95
        %p401 = pneg %p92
        %p402 = pneg %p116
        %p403 = pneg %p113
        %p404 = pneg %p137
        %p405 = pneg %p134
        %p406 = pneg %p158
        %p407 = pneg %p155
        %p408 = pneg %p179
        %p409 = pneg %p176
        %s410 = ssub.s32 1, %s29
        %s411 = smul.u32 %s30, %s410
        %s412 = sadd.s32 %s411, %s29
        %s413 = smul.u32 16, %s412
        %p414 = scmp.lt.s32.totalorder %s413, 31
        %s415 = scalar_select %p414, %s413, 31
        %s416 = smul.addr %s415, 2
        %s417 = smul.addr %s416, 4
        %s418 = scalar_lea.vmem %s7, %s417
        %p419 = pneg %p211
        %p420 = pneg %p208
        %s421 = sand.u32 %s25, 1
        %s422 = scalar_lea.sflag [#allocation5], %s421
        %s423 = sand.u32 %s226, 1
        %s424 = smul.addr %s423, 128
        %s425 = scalar_lea.vmem [#allocation9], %s424
        %p426 = pneg %p239
        %p427 = pneg %p236
        %p428 = pneg %p267
        %p429 = pneg %p264
        %s430 = sand.u32 %s254, 1
        %s431 = scalar_lea.sflag [#allocation6], %s430
        %s432 = sand.u32 %s254, 1
        %s433 = smul.addr %s432, 128
        %s434 = scalar_lea.vmem [#allocation10], %s433
        %s435 = ssub.s32 1, %s29
        %s436 = smul.u32 %s30, %s435
        %s437 = sadd.s32 %s436, %s29
        %s438 = smul.u32 16, %s437
        %p439 = scmp.lt.s32.totalorder %s438, 31
        %s440 = scalar_select %p439, %s438, 31
        %s441 = smul.addr %s440, 2
        %s442 = smul.addr %s441, 4
        %s443 = scalar_lea.vmem %s7, %s442
        %s444 = ssub.s32 1, %s29
        %s445 = smul.u32 %s30, %s444
        %s446 = sadd.s32 %s445, %s29
        %s447 = smul.u32 16, %s446
        %s448 = smul.u32 %s30, %s29
        %s449 = smul.u32 16, %s448
        %s450 = smul.u32 %s30, %s29
        %s451 = smul.u32 16, %s450
        %s452 = smul.u32 %s30, 128
        %p453 = scmp.eq.s32.totalorder %s29, 0
        %p454 = scmp.eq.s32.totalorder %s30, 0
        %p455 = pnand %p453, %p454
        %p456 = pneg %p455
        // Predicated region
        $region69: #{tpu_custom_call.1} parent=55 // pred_check
          _
        $region70: #{tpu_custom_call.1} parent=55 // pred_check_branch
          %458 = sbr.rel (%p455) target = $region72
        $region71: #{tpu_custom_call.1} parent=55 // pred_region
          %v459 = vld [vmem:[%s2] sm:$0xff]
          %v460 = vld [vmem:[%s2 + $0x8] sm:$0xff]
          %v461 = vld [vmem:[%s2 + $0x10] sm:$0xff]
          %v462 = vld [vmem:[%s2 + $0x18] sm:$0xff]
          %v463 = vld [vmem:[%s2 + $0x20] sm:$0xff]
          %v464 = vld [vmem:[%s2 + $0x28] sm:$0xff]
          %v465 = vld [vmem:[%s2 + $0x30] sm:$0xff]
          %v466 = vld [vmem:[%s2 + $0x38] sm:$0xff]
          %v467 = vld [vmem:[%s2 + $0x40] sm:$0xff]
          %v468 = vld [vmem:[%s2 + $0x48] sm:$0xff]
          %v469 = vld [vmem:[%s2 + $0x50] sm:$0xff]
          %v470 = vld [vmem:[%s2 + $0x58] sm:$0xff]
          %v471 = vld [vmem:[%s2 + $0x60] sm:$0xff]
          %v472 = vld [vmem:[%s2 + $0x68] sm:$0xff]
          %v473 = vld [vmem:[%s2 + $0x70] sm:$0xff]
          %v474 = vld [vmem:[%s2 + $0x78] sm:$0xff]
          %v475 = vld [vmem:[%s2 + $0x80] sm:$0xff]
          %v476 = vld [vmem:[%s2 + $0x88] sm:$0xff]
          %v477 = vld [vmem:[%s2 + $0x90] sm:$0xff]
          %v478 = vld [vmem:[%s2 + $0x98] sm:$0xff]
          %v479 = vld [vmem:[%s2 + $0xa0] sm:$0xff]
          %v480 = vld [vmem:[%s2 + $0xa8] sm:$0xff]
          %v481 = vld [vmem:[%s2 + $0xb0] sm:$0xff]
          %v482 = vld [vmem:[%s2 + $0xb8] sm:$0xff]
          %v483 = vld [vmem:[%s2 + $0xc0] sm:$0xff]
          %v484 = vld [vmem:[%s2 + $0xc8] sm:$0xff]
          %v485 = vld [vmem:[%s2 + $0xd0] sm:$0xff]
          %v486 = vld [vmem:[%s2 + $0xd8] sm:$0xff]
          %v487 = vld [vmem:[%s2 + $0xe0] sm:$0xff]
          %v488 = vld [vmem:[%s2 + $0xe8] sm:$0xff]
          %v489 = vld [vmem:[%s2 + $0xf0] sm:$0xff]
          %v490 = vld [vmem:[%s2 + $0xf8] sm:$0xff]
          %v491 = vld [vmem:[#allocation4] sm:$0xff]
          %v492 = vld [vmem:[#allocation4 + $0x8] sm:$0xff]
          %v493 = vld [vmem:[#allocation4 + $0x10] sm:$0xff]
          %v494 = vld [vmem:[#allocation4 + $0x18] sm:$0xff]
          %v495 = vld [vmem:[#allocation4 + $0x20] sm:$0xff]
          %v496 = vld [vmem:[#allocation4 + $0x28] sm:$0xff]
          %v497 = vld [vmem:[#allocation4 + $0x30] sm:$0xff]
          %v498 = vld [vmem:[#allocation4 + $0x38] sm:$0xff]
          %v499 = vld [vmem:[#allocation4 + $0x40] sm:$0xff]
          %v500 = vld [vmem:[#allocation4 + $0x48] sm:$0xff]
          %v501 = vld [vmem:[#allocation4 + $0x50] sm:$0xff]
          %v502 = vld [vmem:[#allocation4 + $0x58] sm:$0xff]
          %v503 = vld [vmem:[#allocation4 + $0x60] sm:$0xff]
          %v504 = vld [vmem:[#allocation4 + $0x68] sm:$0xff]
          %v505 = vld [vmem:[#allocation4 + $0x70] sm:$0xff]
          %v506 = vld [vmem:[#allocation4 + $0x78] sm:$0xff]
          %v507 = vld [vmem:[%s4] sm:$0x1]
          %v509 = vperm.slane %v507, 0
          %511 = vmatpush.msra.mxu0 %v506
          %512 = vmatpush.msra.mxu0 %v505
          %513 = vmatpush.msra.mxu0 %v504
          %514 = vmatpush.msra.mxu0 %v503
          %515 = vmatpush.msra.mxu0 %v502
          %516 = vmatpush.msra.mxu0 %v501
          %517 = vmatpush.msra.mxu0 %v500
          %518 = vmatpush.msra.mxu0 %v499
          %519 = vmatpush.msra.mxu0 %v498
          %520 = vmatpush.msra.mxu0 %v497
          %521 = vmatpush.msra.mxu0 %v496
          %522 = vmatpush.msra.mxu0 %v495
          %523 = vmatpush.msra.mxu0 %v494
          %524 = vmatpush.msra.mxu0 %v493
          %525 = vmatpush.msra.mxu0 %v492
          %526 = vmatpush.msra.mxu0 %v491
          %527 = vmatmul.f32.gmra.mxu0 %v459
          %v528 = vpop.f32.mrf.mxu0
          %v529 = vadd.f32 %v509, %v528
          %530 = vmatmul.f32.gmra.mxu0 %v460
          %v531 = vpop.f32.mrf.mxu0
          %v532 = vadd.f32 %v509, %v531
          %533 = vmatmul.f32.gmra.mxu0 %v461
          %v534 = vpop.f32.mrf.mxu0
          %v535 = vadd.f32 %v509, %v534
          %536 = vmatmul.f32.gmra.mxu0 %v462
          %v537 = vpop.f32.mrf.mxu0
          %v538 = vadd.f32 %v509, %v537
          %539 = vmatmul.f32.gmra.mxu0 %v463
          %v540 = vpop.f32.mrf.mxu0
          %v541 = vadd.f32 %v509, %v540
          %542 = vmatmul.f32.gmra.mxu0 %v464
          %v543 = vpop.f32.mrf.mxu0
          %v544 = vadd.f32 %v509, %v543
          %545 = vmatmul.f32.gmra.mxu0 %v465
          %v546 = vpop.f32.mrf.mxu0
          %v547 = vadd.f32 %v509, %v546
          %548 = vmatmul.f32.gmra.mxu0 %v466
          %v549 = vpop.f32.mrf.mxu0
          %v550 = vadd.f32 %v509, %v549
          %551 = vmatmul.f32.gmra.mxu0 %v467
          %v552 = vpop.f32.mrf.mxu0
          %v553 = vadd.f32 %v509, %v552
          %554 = vmatmul.f32.gmra.mxu0 %v468
          %v555 = vpop.f32.mrf.mxu0
          %v556 = vadd.f32 %v509, %v555
          %557 = vmatmul.f32.gmra.mxu0 %v469
          %v558 = vpop.f32.mrf.mxu0
          %v559 = vadd.f32 %v509, %v558
          %560 = vmatmul.f32.gmra.mxu0 %v470
          %v561 = vpop.f32.mrf.mxu0
          %v562 = vadd.f32 %v509, %v561
          %563 = vmatmul.f32.gmra.mxu0 %v471
          %v564 = vpop.f32.mrf.mxu0
          %v565 = vadd.f32 %v509, %v564
          %566 = vmatmul.f32.gmra.mxu0 %v472
          %v567 = vpop.f32.mrf.mxu0
          %v568 = vadd.f32 %v509, %v567
          %569 = vmatmul.f32.gmra.mxu0 %v473
          %v570 = vpop.f32.mrf.mxu0
          %v571 = vadd.f32 %v509, %v570
          %572 = vmatmul.f32.gmra.mxu0 %v474
          %v573 = vpop.f32.mrf.mxu0
          %v574 = vadd.f32 %v509, %v573
          %575 = vmatmul.f32.gmra.mxu0 %v475
          %v576 = vpop.f32.mrf.mxu0
          %v577 = vadd.f32 %v509, %v576
          %578 = vmatmul.f32.gmra.mxu0 %v476
          %v579 = vpop.f32.mrf.mxu0
          %v580 = vadd.f32 %v509, %v579
          %581 = vmatmul.f32.gmra.mxu0 %v477
          %v582 = vpop.f32.mrf.mxu0
          %v583 = vadd.f32 %v509, %v582
          %584 = vmatmul.f32.gmra.mxu0 %v478
          %v585 = vpop.f32.mrf.mxu0
          %v586 = vadd.f32 %v509, %v585
          %587 = vmatmul.f32.gmra.mxu0 %v479
          %v588 = vpop.f32.mrf.mxu0
          %v589 = vadd.f32 %v509, %v588
          %590 = vmatmul.f32.gmra.mxu0 %v480
          %v591 = vpop.f32.mrf.mxu0
          %v592 = vadd.f32 %v509, %v591
          %593 = vmatmul.f32.gmra.mxu0 %v481
          %v594 = vpop.f32.mrf.mxu0
          %v595 = vadd.f32 %v509, %v594
          %596 = vmatmul.f32.gmra.mxu0 %v482
          %v597 = vpop.f32.mrf.mxu0
          %v598 = vadd.f32 %v509, %v597
          %599 = vmatmul.f32.gmra.mxu0 %v483
          %v600 = vpop.f32.mrf.mxu0
          %v601 = vadd.f32 %v509, %v600
          %602 = vmatmul.f32.gmra.mxu0 %v484
          %v603 = vpop.f32.mrf.mxu0
          %v604 = vadd.f32 %v509, %v603
          %605 = vmatmul.f32.gmra.mxu0 %v485
          %v606 = vpop.f32.mrf.mxu0
          %v607 = vadd.f32 %v509, %v606
          %608 = vmatmul.f32.gmra.mxu0 %v486
          %v609 = vpop.f32.mrf.mxu0
          %v610 = vadd.f32 %v509, %v609
          %611 = vmatmul.f32.gmra.mxu0 %v487
          %v612 = vpop.f32.mrf.mxu0
          %v613 = vadd.f32 %v509, %v612
          %614 = vmatmul.f32.gmra.mxu0 %v488
          %v615 = vpop.f32.mrf.mxu0
          %v616 = vadd.f32 %v509, %v615
          %617 = vmatmul.f32.gmra.mxu0 %v489
          %v618 = vpop.f32.mrf.mxu0
          %v619 = vadd.f32 %v509, %v618
          %620 = vmatmul.f32.gmra.mxu0 %v490
          %v621 = vpop.f32.mrf.mxu0
          %v622 = vadd.f32 %v509, %v621
          %623 = vdwg.mxu0
          %v624 = vld [vmem:[%s0] sm:$0xff]
          %v625 = vld [vmem:[%s0 + $0x8] sm:$0xff]
          %v626 = vld [vmem:[%s0 + $0x10] sm:$0xff]
          %v627 = vld [vmem:[%s0 + $0x18] sm:$0xff]
          %v628 = vld [vmem:[%s0 + $0x20] sm:$0xff]
          %v629 = vld [vmem:[%s0 + $0x28] sm:$0xff]
          %v630 = vld [vmem:[%s0 + $0x30] sm:$0xff]
          %v631 = vld [vmem:[%s0 + $0x38] sm:$0xff]
          %v632 = vld [vmem:[%s0 + $0x40] sm:$0xff]
          %v633 = vld [vmem:[%s0 + $0x48] sm:$0xff]
          %v634 = vld [vmem:[%s0 + $0x50] sm:$0xff]
          %v635 = vld [vmem:[%s0 + $0x58] sm:$0xff]
          %v636 = vld [vmem:[%s0 + $0x60] sm:$0xff]
          %v637 = vld [vmem:[%s0 + $0x68] sm:$0xff]
          %v638 = vld [vmem:[%s0 + $0x70] sm:$0xff]
          %v639 = vld [vmem:[%s0 + $0x78] sm:$0xff]
          %v640 = vld [vmem:[%s0 + $0x80] sm:$0xff]
          %v641 = vld [vmem:[%s0 + $0x88] sm:$0xff]
          %v642 = vld [vmem:[%s0 + $0x90] sm:$0xff]
          %v643 = vld [vmem:[%s0 + $0x98] sm:$0xff]
          %v644 = vld [vmem:[%s0 + $0xa0] sm:$0xff]
          %v645 = vld [vmem:[%s0 + $0xa8] sm:$0xff]
          %v646 = vld [vmem:[%s0 + $0xb0] sm:$0xff]
          %v647 = vld [vmem:[%s0 + $0xb8] sm:$0xff]
          %v648 = vld [vmem:[%s0 + $0xc0] sm:$0xff]
          %v649 = vld [vmem:[%s0 + $0xc8] sm:$0xff]
          %v650 = vld [vmem:[%s0 + $0xd0] sm:$0xff]
          %v651 = vld [vmem:[%s0 + $0xd8] sm:$0xff]
          %v652 = vld [vmem:[%s0 + $0xe0] sm:$0xff]
          %v653 = vld [vmem:[%s0 + $0xe8] sm:$0xff]
          %v654 = vld [vmem:[%s0 + $0xf0] sm:$0xff]
          %v655 = vld [vmem:[%s0 + $0xf8] sm:$0xff]
          %vm656 = vcmp.gt.f32.partialorder %v624, 0.0
          %vm657 = vcmp.gt.f32.partialorder %v625, 0.0
          %vm658 = vcmp.gt.f32.partialorder %v626, 0.0
          %vm659 = vcmp.gt.f32.partialorder %v627, 0.0
          %vm660 = vcmp.gt.f32.partialorder %v628, 0.0
          %vm661 = vcmp.gt.f32.partialorder %v629, 0.0
          %vm662 = vcmp.gt.f32.partialorder %v630, 0.0
          %vm663 = vcmp.gt.f32.partialorder %v631, 0.0
          %vm664 = vcmp.gt.f32.partialorder %v632, 0.0
          %vm665 = vcmp.gt.f32.partialorder %v633, 0.0
          %vm666 = vcmp.gt.f32.partialorder %v634, 0.0
          %vm667 = vcmp.gt.f32.partialorder %v635, 0.0
          %vm668 = vcmp.gt.f32.partialorder %v636, 0.0
          %vm669 = vcmp.gt.f32.partialorder %v637, 0.0
          %vm670 = vcmp.gt.f32.partialorder %v638, 0.0
          %vm671 = vcmp.gt.f32.partialorder %v639, 0.0
          %vm672 = vcmp.gt.f32.partialorder %v640, 0.0
          %vm673 = vcmp.gt.f32.partialorder %v641, 0.0
          %vm674 = vcmp.gt.f32.partialorder %v642, 0.0
          %vm675 = vcmp.gt.f32.partialorder %v643, 0.0
          %vm676 = vcmp.gt.f32.partialorder %v644, 0.0
          %vm677 = vcmp.gt.f32.partialorder %v645, 0.0
          %vm678 = vcmp.gt.f32.partialorder %v646, 0.0
          %vm679 = vcmp.gt.f32.partialorder %v647, 0.0
          %vm680 = vcmp.gt.f32.partialorder %v648, 0.0
          %vm681 = vcmp.gt.f32.partialorder %v649, 0.0
          %vm682 = vcmp.gt.f32.partialorder %v650, 0.0
          %vm683 = vcmp.gt.f32.partialorder %v651, 0.0
          %vm684 = vcmp.gt.f32.partialorder %v652, 0.0
          %vm685 = vcmp.gt.f32.partialorder %v653, 0.0
          %vm686 = vcmp.gt.f32.partialorder %v654, 0.0
          %vm687 = vcmp.gt.f32.partialorder %v655, 0.0
          %v688 = vsel %vm656, %v624, 1.0
          %v689 = vsel %vm657, %v625, 1.0
          %v690 = vsel %vm658, %v626, 1.0
          %v691 = vsel %vm659, %v627, 1.0
          %v692 = vsel %vm660, %v628, 1.0
          %v693 = vsel %vm661, %v629, 1.0
          %v694 = vsel %vm662, %v630, 1.0
          %v695 = vsel %vm663, %v631, 1.0
          %v696 = vsel %vm664, %v632, 1.0
          %v697 = vsel %vm665, %v633, 1.0
          %v698 = vsel %vm666, %v634, 1.0
          %v699 = vsel %vm667, %v635, 1.0
          %v700 = vsel %vm668, %v636, 1.0
          %v701 = vsel %vm669, %v637, 1.0
          %v702 = vsel %vm670, %v638, 1.0
          %v703 = vsel %vm671, %v639, 1.0
          %v704 = vsel %vm672, %v640, 1.0
          %v705 = vsel %vm673, %v641, 1.0
          %v706 = vsel %vm674, %v642, 1.0
          %v707 = vsel %vm675, %v643, 1.0
          %v708 = vsel %vm676, %v644, 1.0
          %v709 = vsel %vm677, %v645, 1.0
          %v710 = vsel %vm678, %v646, 1.0
          %v711 = vsel %vm679, %v647, 1.0
          %v712 = vsel %vm680, %v648, 1.0
          %v713 = vsel %vm681, %v649, 1.0
          %v714 = vsel %vm682, %v650, 1.0
          %v715 = vsel %vm683, %v651, 1.0
          %v716 = vsel %vm684, %v652, 1.0
          %v717 = vsel %vm685, %v653, 1.0
          %v718 = vsel %vm686, %v654, 1.0
          %v719 = vsel %vm687, %v655, 1.0
          %v720 = vrcp.pop %v688
          %v721 = vrcp.pop %v689
          %v722 = vrcp.pop %v690
          %v723 = vrcp.pop %v691
          %v724 = vrcp.pop %v692
          %v725 = vrcp.pop %v693
          %v726 = vrcp.pop %v694
          %v727 = vrcp.pop %v695
          %v728 = vrcp.pop %v696
          %v729 = vrcp.pop %v697
          %v730 = vrcp.pop %v698
          %v731 = vrcp.pop %v699
          %v732 = vrcp.pop %v700
          %v733 = vrcp.pop %v701
          %v734 = vrcp.pop %v702
          %v735 = vrcp.pop %v703
          %v736 = vrcp.pop %v704
          %v737 = vrcp.pop %v705
          %v738 = vrcp.pop %v706
          %v739 = vrcp.pop %v707
          %v740 = vrcp.pop %v708
          %v741 = vrcp.pop %v709
          %v742 = vrcp.pop %v710
          %v743 = vrcp.pop %v711
          %v744 = vrcp.pop %v712
          %v745 = vrcp.pop %v713
          %v746 = vrcp.pop %v714
          %v747 = vrcp.pop %v715
          %v748 = vrcp.pop %v716
          %v749 = vrcp.pop %v717
          %v750 = vrcp.pop %v718
          %v751 = vrcp.pop %v719
          %v752 = vsel %vm656, %v720, 0.0
          %v753 = vsel %vm657, %v721, 0.0
          %v754 = vsel %vm658, %v722, 0.0
          %v755 = vsel %vm659, %v723, 0.0
          %v756 = vsel %vm660, %v724, 0.0
          %v757 = vsel %vm661, %v725, 0.0
          %v758 = vsel %vm662, %v726, 0.0
          %v759 = vsel %vm663, %v727, 0.0
          %v760 = vsel %vm664, %v728, 0.0
          %v761 = vsel %vm665, %v729, 0.0
          %v762 = vsel %vm666, %v730, 0.0
          %v763 = vsel %vm667, %v731, 0.0
          %v764 = vsel %vm668, %v732, 0.0
          %v765 = vsel %vm669, %v733, 0.0
          %v766 = vsel %vm670, %v734, 0.0
          %v767 = vsel %vm671, %v735, 0.0
          %v768 = vsel %vm672, %v736, 0.0
          %v769 = vsel %vm673, %v737, 0.0
          %v770 = vsel %vm674, %v738, 0.0
          %v771 = vsel %vm675, %v739, 0.0
          %v772 = vsel %vm676, %v740, 0.0
          %v773 = vsel %vm677, %v741, 0.0
          %v774 = vsel %vm678, %v742, 0.0
          %v775 = vsel %vm679, %v743, 0.0
          %v776 = vsel %vm680, %v744, 0.0
          %v777 = vsel %vm681, %v745, 0.0
          %v778 = vsel %vm682, %v746, 0.0
          %v779 = vsel %vm683, %v747, 0.0
          %v780 = vsel %vm684, %v748, 0.0
          %v781 = vsel %vm685, %v749, 0.0
          %v782 = vsel %vm686, %v750, 0.0
          %v783 = vsel %vm687, %v751, 0.0
          %785 = vset.pattern.permute.xlu0 0
          %786 = vperm.xlu0 %785, %v752
          %v787 = vpop.permute.xlu0 %786
          %790 = vset.pattern.permute.xlu0 0
          %791 = vperm.xlu0 %790, %v753
          %v792 = vpop.permute.xlu0 %791
          %795 = vset.pattern.permute.xlu0 0
          %796 = vperm.xlu0 %795, %v754
          %v797 = vpop.permute.xlu0 %796
          %800 = vset.pattern.permute.xlu0 0
          %801 = vperm.xlu0 %800, %v755
          %v802 = vpop.permute.xlu0 %801
          %805 = vset.pattern.permute.xlu0 0
          %806 = vperm.xlu0 %805, %v756
          %v807 = vpop.permute.xlu0 %806
          %810 = vset.pattern.permute.xlu0 0
          %811 = vperm.xlu0 %810, %v757
          %v812 = vpop.permute.xlu0 %811
          %815 = vset.pattern.permute.xlu0 0
          %816 = vperm.xlu0 %815, %v758
          %v817 = vpop.permute.xlu0 %816
          %820 = vset.pattern.permute.xlu0 0
          %821 = vperm.xlu0 %820, %v759
          %v822 = vpop.permute.xlu0 %821
          %825 = vset.pattern.permute.xlu0 0
          %826 = vperm.xlu0 %825, %v760
          %v827 = vpop.permute.xlu0 %826
          %830 = vset.pattern.permute.xlu0 0
          %831 = vperm.xlu0 %830, %v761
          %v832 = vpop.permute.xlu0 %831
          %835 = vset.pattern.permute.xlu0 0
          %836 = vperm.xlu0 %835, %v762
          %v837 = vpop.permute.xlu0 %836
          %840 = vset.pattern.permute.xlu0 0
          %841 = vperm.xlu0 %840, %v763
          %v842 = vpop.permute.xlu0 %841
          %845 = vset.pattern.permute.xlu0 0
          %846 = vperm.xlu0 %845, %v764
          %v847 = vpop.permute.xlu0 %846
          %850 = vset.pattern.permute.xlu0 0
          %851 = vperm.xlu0 %850, %v765
          %v852 = vpop.permute.xlu0 %851
          %855 = vset.pattern.permute.xlu0 0
          %856 = vperm.xlu0 %855, %v766
          %v857 = vpop.permute.xlu0 %856
          %860 = vset.pattern.permute.xlu0 0
          %861 = vperm.xlu0 %860, %v767
          %v862 = vpop.permute.xlu0 %861
          %865 = vset.pattern.permute.xlu0 0
          %866 = vperm.xlu0 %865, %v768
          %v867 = vpop.permute.xlu0 %866
          %870 = vset.pattern.permute.xlu0 0
          %871 = vperm.xlu0 %870, %v769
          %v872 = vpop.permute.xlu0 %871
          %875 = vset.pattern.permute.xlu0 0
          %876 = vperm.xlu0 %875, %v770
          %v877 = vpop.permute.xlu0 %876
          %880 = vset.pattern.permute.xlu0 0
          %881 = vperm.xlu0 %880, %v771
          %v882 = vpop.permute.xlu0 %881
          %885 = vset.pattern.permute.xlu0 0
          %886 = vperm.xlu0 %885, %v772
          %v887 = vpop.permute.xlu0 %886
          %890 = vset.pattern.permute.xlu0 0
          %891 = vperm.xlu0 %890, %v773
          %v892 = vpop.permute.xlu0 %891
          %895 = vset.pattern.permute.xlu0 0
          %896 = vperm.xlu0 %895, %v774
          %v897 = vpop.permute.xlu0 %896
          %900 = vset.pattern.permute.xlu0 0
          %901 = vperm.xlu0 %900, %v775
          %v902 = vpop.permute.xlu0 %901
          %905 = vset.pattern.permute.xlu0 0
          %906 = vperm.xlu0 %905, %v776
          %v907 = vpop.permute.xlu0 %906
          %910 = vset.pattern.permute.xlu0 0
          %911 = vperm.xlu0 %910, %v777
          %v912 = vpop.permute.xlu0 %911
          %915 = vset.pattern.permute.xlu0 0
          %916 = vperm.xlu0 %915, %v778
          %v917 = vpop.permute.xlu0 %916
          %920 = vset.pattern.permute.xlu0 0
          %921 = vperm.xlu0 %920, %v779
          %v922 = vpop.permute.xlu0 %921
          %925 = vset.pattern.permute.xlu0 0
          %926 = vperm.xlu0 %925, %v780
          %v927 = vpop.permute.xlu0 %926
          %930 = vset.pattern.permute.xlu0 0
          %931 = vperm.xlu0 %930, %v781
          %v932 = vpop.permute.xlu0 %931
          %935 = vset.pattern.permute.xlu0 0
          %936 = vperm.xlu0 %935, %v782
          %v937 = vpop.permute.xlu0 %936
          %940 = vset.pattern.permute.xlu0 0
          %941 = vperm.xlu0 %940, %v783
          %v942 = vpop.permute.xlu0 %941
          %v944 = vmul.f32 %v529, %v787
          %v945 = vmul.f32 %v532, %v792
          %v946 = vmul.f32 %v535, %v797
          %v947 = vmul.f32 %v538, %v802
          %v948 = vmul.f32 %v541, %v807
          %v949 = vmul.f32 %v544, %v812
          %v950 = vmul.f32 %v547, %v817
          %v951 = vmul.f32 %v550, %v822
          %v952 = vmul.f32 %v553, %v827
          %v953 = vmul.f32 %v556, %v832
          %v954 = vmul.f32 %v559, %v837
          %v955 = vmul.f32 %v562, %v842
          %v956 = vmul.f32 %v565, %v847
          %v957 = vmul.f32 %v568, %v852
          %v958 = vmul.f32 %v571, %v857
          %v959 = vmul.f32 %v574, %v862
          %v960 = vmul.f32 %v577, %v867
          %v961 = vmul.f32 %v580, %v872
          %v962 = vmul.f32 %v583, %v877
          %v963 = vmul.f32 %v586, %v882
          %v964 = vmul.f32 %v589, %v887
          %v965 = vmul.f32 %v592, %v892
          %v966 = vmul.f32 %v595, %v897
          %v967 = vmul.f32 %v598, %v902
          %v968 = vmul.f32 %v601, %v907
          %v969 = vmul.f32 %v604, %v912
          %v970 = vmul.f32 %v607, %v917
          %v971 = vmul.f32 %v610, %v922
          %v972 = vmul.f32 %v613, %v927
          %v973 = vmul.f32 %v616, %v932
          %v974 = vmul.f32 %v619, %v937
          %v975 = vmul.f32 %v622, %v942
          %v976 = vpack.c.bf16 %v944, %v944
          %v977 = vpack.c.bf16 %v945, %v945
          %v978 = vpack.c.bf16 %v946, %v946
          %v979 = vpack.c.bf16 %v947, %v947
          %v980 = vpack.c.bf16 %v948, %v948
          %v981 = vpack.c.bf16 %v949, %v949
          %v982 = vpack.c.bf16 %v950, %v950
          %v983 = vpack.c.bf16 %v951, %v951
          %v984 = vpack.c.bf16 %v952, %v952
          %v985 = vpack.c.bf16 %v953, %v953
          %v986 = vpack.c.bf16 %v954, %v954
          %v987 = vpack.c.bf16 %v955, %v955
          %v988 = vpack.c.bf16 %v956, %v956
          %v989 = vpack.c.bf16 %v957, %v957
          %v990 = vpack.c.bf16 %v958, %v958
          %v991 = vpack.c.bf16 %v959, %v959
          %v992 = vpack.c.bf16 %v960, %v960
          %v993 = vpack.c.bf16 %v961, %v961
          %v994 = vpack.c.bf16 %v962, %v962
          %v995 = vpack.c.bf16 %v963, %v963
          %v996 = vpack.c.bf16 %v964, %v964
          %v997 = vpack.c.bf16 %v965, %v965
          %v998 = vpack.c.bf16 %v966, %v966
          %v999 = vpack.c.bf16 %v967, %v967
          %v1000 = vpack.c.bf16 %v968, %v968
          %v1001 = vpack.c.bf16 %v969, %v969
          %v1002 = vpack.c.bf16 %v970, %v970
          %v1003 = vpack.c.bf16 %v971, %v971
          %v1004 = vpack.c.bf16 %v972, %v972
          %v1005 = vpack.c.bf16 %v973, %v973
          %v1006 = vpack.c.bf16 %v974, %v974
          %v1007 = vpack.c.bf16 %v975, %v975
          %1008 = vst [vmem:[#allocation2] sm:$0xf] %v976
          %1009 = vst [vmem:[#allocation2 + $0x4] sm:$0xf] %v977
          %1010 = vst [vmem:[#allocation2 + $0x8] sm:$0xf] %v978
          %1011 = vst [vmem:[#allocation2 + $0xc] sm:$0xf] %v979
          %1012 = vst [vmem:[#allocation2 + $0x10] sm:$0xf] %v980
          %1013 = vst [vmem:[#allocation2 + $0x14] sm:$0xf] %v981
          %1014 = vst [vmem:[#allocation2 + $0x18] sm:$0xf] %v982
          %1015 = vst [vmem:[#allocation2 + $0x1c] sm:$0xf] %v983
          %1016 = vst [vmem:[#allocation2 + $0x20] sm:$0xf] %v984
          %1017 = vst [vmem:[#allocation2 + $0x24] sm:$0xf] %v985
          %1018 = vst [vmem:[#allocation2 + $0x28] sm:$0xf] %v986
          %1019 = vst [vmem:[#allocation2 + $0x2c] sm:$0xf] %v987
          %1020 = vst [vmem:[#allocation2 + $0x30] sm:$0xf] %v988
          %1021 = vst [vmem:[#allocation2 + $0x34] sm:$0xf] %v989
          %1022 = vst [vmem:[#allocation2 + $0x38] sm:$0xf] %v990
          %1023 = vst [vmem:[#allocation2 + $0x3c] sm:$0xf] %v991
          %1024 = vst [vmem:[#allocation2 + $0x40] sm:$0xf] %v992
          %1025 = vst [vmem:[#allocation2 + $0x44] sm:$0xf] %v993
          %1026 = vst [vmem:[#allocation2 + $0x48] sm:$0xf] %v994
          %1027 = vst [vmem:[#allocation2 + $0x4c] sm:$0xf] %v995
          %1028 = vst [vmem:[#allocation2 + $0x50] sm:$0xf] %v996
          %1029 = vst [vmem:[#allocation2 + $0x54] sm:$0xf] %v997
          %1030 = vst [vmem:[#allocation2 + $0x58] sm:$0xf] %v998
          %1031 = vst [vmem:[#allocation2 + $0x5c] sm:$0xf] %v999
          %1032 = vst [vmem:[#allocation2 + $0x60] sm:$0xf] %v1000
          %1033 = vst [vmem:[#allocation2 + $0x64] sm:$0xf] %v1001
          %1034 = vst [vmem:[#allocation2 + $0x68] sm:$0xf] %v1002
          %1035 = vst [vmem:[#allocation2 + $0x6c] sm:$0xf] %v1003
          %1036 = vst [vmem:[#allocation2 + $0x70] sm:$0xf] %v1004
          %1037 = vst [vmem:[#allocation2 + $0x74] sm:$0xf] %v1005
          %1038 = vst [vmem:[#allocation2 + $0x78] sm:$0xf] %v1006
          %1039 = vst [vmem:[#allocation2 + $0x7c] sm:$0xf] %v1007
        $region72: #{tpu_custom_call.1} parent=55 // pred_fallthru
          _
        // Predicated region
        $region73: #{tpu_custom_call.1} parent=55 // pred_check
          %p1040 = pneg %p453
        $region74: #{tpu_custom_call.1} parent=55 // pred_check_branch
          %1042 = sbr.rel (%p1040) target = $region76
        $region75: #{tpu_custom_call.1} parent=55 // pred_region
          %v1043 = vld [vmem:[%s443] sm:$0xff]
          %v1044 = vld [vmem:[%s443 + $0x8] sm:$0xff]
          %v1045 = vld [vmem:[%s443 + $0x10] sm:$0xff]
          %v1046 = vld [vmem:[%s443 + $0x18] sm:$0xff]
          %v1047 = vld [vmem:[%s443 + $0x20] sm:$0xff]
          %v1048 = vld [vmem:[%s443 + $0x28] sm:$0xff]
          %v1049 = vld [vmem:[%s443 + $0x30] sm:$0xff]
          %v1050 = vld [vmem:[%s443 + $0x38] sm:$0xff]
          %v1051 = vld [vmem:[%s443 + $0x40] sm:$0xff]
          %v1052 = vld [vmem:[%s443 + $0x48] sm:$0xff]
          %v1053 = vld [vmem:[%s443 + $0x50] sm:$0xff]
          %v1054 = vld [vmem:[%s443 + $0x58] sm:$0xff]
          %v1055 = vld [vmem:[%s443 + $0x60] sm:$0xff]
          %v1056 = vld [vmem:[%s443 + $0x68] sm:$0xff]
          %v1057 = vld [vmem:[%s443 + $0x70] sm:$0xff]
          %v1058 = vld [vmem:[%s443 + $0x78] sm:$0xff]
          %v1059 = vld [vmem:[#allocation2] sm:$0xf]
          %v1060 = vld [vmem:[#allocation2 + $0x4] sm:$0xf]
          %v1061 = vld [vmem:[#allocation2 + $0x8] sm:$0xf]
          %v1062 = vld [vmem:[#allocation2 + $0xc] sm:$0xf]
          %v1063 = vld [vmem:[#allocation2 + $0x10] sm:$0xf]
          %v1064 = vld [vmem:[#allocation2 + $0x14] sm:$0xf]
          %v1065 = vld [vmem:[#allocation2 + $0x18] sm:$0xf]
          %v1066 = vld [vmem:[#allocation2 + $0x1c] sm:$0xf]
          %v1067 = vld [vmem:[#allocation2 + $0x20] sm:$0xf]
          %v1068 = vld [vmem:[#allocation2 + $0x24] sm:$0xf]
          %v1069 = vld [vmem:[#allocation2 + $0x28] sm:$0xf]
          %v1070 = vld [vmem:[#allocation2 + $0x2c] sm:$0xf]
          %v1071 = vld [vmem:[#allocation2 + $0x30] sm:$0xf]
          %v1072 = vld [vmem:[#allocation2 + $0x34] sm:$0xf]
          %v1073 = vld [vmem:[#allocation2 + $0x38] sm:$0xf]
          %v1074 = vld [vmem:[#allocation2 + $0x3c] sm:$0xf]
          %v1075 = vld [vmem:[#allocation2 + $0x40] sm:$0xf]
          %v1076 = vld [vmem:[#allocation2 + $0x44] sm:$0xf]
          %v1077 = vld [vmem:[#allocation2 + $0x48] sm:$0xf]
          %v1078 = vld [vmem:[#allocation2 + $0x4c] sm:$0xf]
          %v1079 = vld [vmem:[#allocation2 + $0x50] sm:$0xf]
          %v1080 = vld [vmem:[#allocation2 + $0x54] sm:$0xf]
          %v1081 = vld [vmem:[#allocation2 + $0x58] sm:$0xf]
          %v1082 = vld [vmem:[#allocation2 + $0x5c] sm:$0xf]
          %v1083 = vld [vmem:[#allocation2 + $0x60] sm:$0xf]
          %v1084 = vld [vmem:[#allocation2 + $0x64] sm:$0xf]
          %v1085 = vld [vmem:[#allocation2 + $0x68] sm:$0xf]
          %v1086 = vld [vmem:[#allocation2 + $0x6c] sm:$0xf]
          %v1087 = vld [vmem:[#allocation2 + $0x70] sm:$0xf]
          %v1088 = vld [vmem:[#allocation2 + $0x74] sm:$0xf]
          %v1089 = vld [vmem:[#allocation2 + $0x78] sm:$0xf]
          %v1090 = vld [vmem:[#allocation2 + $0x7c] sm:$0xf]
          %v1107 = vunpack.c.l.b16 %v1043
          %v1108 = vunpack.c.h.b16 %v1043
          %v1109 = vunpack.c.l.b16 %v1044
          %v1110 = vunpack.c.h.b16 %v1044
          %v1111 = vunpack.c.l.b16 %v1045
          %v1112 = vunpack.c.h.b16 %v1045
          %v1113 = vunpack.c.l.b16 %v1046
          %v1114 = vunpack.c.h.b16 %v1046
          %v1115 = vunpack.c.l.b16 %v1047
          %v1116 = vunpack.c.h.b16 %v1047
          %v1117 = vunpack.c.l.b16 %v1048
          %v1118 = vunpack.c.h.b16 %v1048
          %v1119 = vunpack.c.l.b16 %v1049
          %v1120 = vunpack.c.h.b16 %v1049
          %v1121 = vunpack.c.l.b16 %v1050
          %v1122 = vunpack.c.h.b16 %v1050
          %v1123 = vunpack.c.l.b16 %v1051
          %v1124 = vunpack.c.h.b16 %v1051
          %v1125 = vunpack.c.l.b16 %v1052
          %v1126 = vunpack.c.h.b16 %v1052
          %v1127 = vunpack.c.l.b16 %v1053
          %v1128 = vunpack.c.h.b16 %v1053
          %v1129 = vunpack.c.l.b16 %v1054
          %v1130 = vunpack.c.h.b16 %v1054
          %v1131 = vunpack.c.l.b16 %v1055
          %v1132 = vunpack.c.h.b16 %v1055
          %v1133 = vunpack.c.l.b16 %v1056
          %v1134 = vunpack.c.h.b16 %v1056
          %v1135 = vunpack.c.l.b16 %v1057
          %v1136 = vunpack.c.h.b16 %v1057
          %v1137 = vunpack.c.l.b16 %v1058
          %v1138 = vunpack.c.h.b16 %v1058
          %v1139 = vpack.c.b16 %v1109, %v1107
          %v1140 = vpack.c.b16 %v1110, %v1108
          %v1141 = vpack.c.b16 %v1113, %v1111
          %v1142 = vpack.c.b16 %v1114, %v1112
          %v1143 = vpack.c.b16 %v1117, %v1115
          %v1144 = vpack.c.b16 %v1118, %v1116
          %v1145 = vpack.c.b16 %v1121, %v1119
          %v1146 = vpack.c.b16 %v1122, %v1120
          %v1147 = vpack.c.b16 %v1125, %v1123
          %v1148 = vpack.c.b16 %v1126, %v1124
          %v1149 = vpack.c.b16 %v1129, %v1127
          %v1150 = vpack.c.b16 %v1130, %v1128
          %v1151 = vpack.c.b16 %v1133, %v1131
          %v1152 = vpack.c.b16 %v1134, %v1132
          %v1153 = vpack.c.b16 %v1137, %v1135
          %v1154 = vpack.c.b16 %v1138, %v1136
          %v1203 = vunpack.c.l.b16 %v1059
          %v1204 = vunpack.c.l.b16 %v1060
          %v1205 = vunpack.c.l.b16 %v1061
          %v1206 = vunpack.c.l.b16 %v1062
          %v1207 = vunpack.c.l.b16 %v1063
          %v1208 = vunpack.c.l.b16 %v1064
          %v1209 = vunpack.c.l.b16 %v1065
          %v1210 = vunpack.c.l.b16 %v1066
          %v1211 = vunpack.c.l.b16 %v1067
          %v1212 = vunpack.c.l.b16 %v1068
          %v1213 = vunpack.c.l.b16 %v1069
          %v1214 = vunpack.c.l.b16 %v1070
          %v1215 = vunpack.c.l.b16 %v1071
          %v1216 = vunpack.c.l.b16 %v1072
          %v1217 = vunpack.c.l.b16 %v1073
          %v1218 = vunpack.c.l.b16 %v1074
          %v1219 = vunpack.c.l.b16 %v1075
          %v1220 = vunpack.c.l.b16 %v1076
          %v1221 = vunpack.c.l.b16 %v1077
          %v1222 = vunpack.c.l.b16 %v1078
          %v1223 = vunpack.c.l.b16 %v1079
          %v1224 = vunpack.c.l.b16 %v1080
          %v1225 = vunpack.c.l.b16 %v1081
          %v1226 = vunpack.c.l.b16 %v1082
          %v1227 = vunpack.c.l.b16 %v1083
          %v1228 = vunpack.c.l.b16 %v1084
          %v1229 = vunpack.c.l.b16 %v1085
          %v1230 = vunpack.c.l.b16 %v1086
          %v1231 = vunpack.c.l.b16 %v1087
          %v1232 = vunpack.c.l.b16 %v1088
          %v1233 = vunpack.c.l.b16 %v1089
          %v1234 = vunpack.c.l.b16 %v1090
          %v1235 = vpack.c.b16 %v1204, %v1203
          %v1236 = vpack.c.b16 %v1206, %v1205
          %v1237 = vpack.c.b16 %v1208, %v1207
          %v1238 = vpack.c.b16 %v1210, %v1209
          %v1239 = vpack.c.b16 %v1212, %v1211
          %v1240 = vpack.c.b16 %v1214, %v1213
          %v1241 = vpack.c.b16 %v1216, %v1215
          %v1242 = vpack.c.b16 %v1218, %v1217
          %v1243 = vpack.c.b16 %v1220, %v1219
          %v1244 = vpack.c.b16 %v1222, %v1221
          %v1245 = vpack.c.b16 %v1224, %v1223
          %v1246 = vpack.c.b16 %v1226, %v1225
          %v1247 = vpack.c.b16 %v1228, %v1227
          %v1248 = vpack.c.b16 %v1230, %v1229
          %v1249 = vpack.c.b16 %v1232, %v1231
          %v1250 = vpack.c.b16 %v1234, %v1233
          %1267 = vmatpush.bf16.msra.mxu0 %v1242
          %1268 = vmatpush.bf16.msra.mxu0 %v1241
          %1269 = vmatpush.bf16.msra.mxu0 %v1240
          %1270 = vmatpush.bf16.msra.mxu0 %v1239
          %1271 = vmatpush.bf16.msra.mxu0 %v1238
          %1272 = vmatpush.bf16.msra.mxu0 %v1237
          %1273 = vmatpush.bf16.msra.mxu0 %v1236
          %1274 = vmatpush.bf16.msra.mxu0 %v1235
          %1275 = vmatmul.bf16.gmra.mxu0 %v1139
          %v1276 = vpop.f32.mrf.mxu0
          %v1277 = vadd.f32 0.0, %v1276
          %v1278 = vpop.f32.mrf.mxu0
          %v1279 = vadd.f32 0.0, %v1278
          %1280 = vmatmul.bf16.gmra.mxu0 %v1141
          %v1281 = vpop.f32.mrf.mxu0
          %v1282 = vadd.f32 0.0, %v1281
          %v1283 = vpop.f32.mrf.mxu0
          %v1284 = vadd.f32 0.0, %v1283
          %1285 = vmatmul.bf16.gmra.mxu0 %v1143
          %v1286 = vpop.f32.mrf.mxu0
          %v1287 = vadd.f32 0.0, %v1286
          %v1288 = vpop.f32.mrf.mxu0
          %v1289 = vadd.f32 0.0, %v1288
          %1290 = vmatmul.bf16.gmra.mxu0 %v1145
          %v1291 = vpop.f32.mrf.mxu0
          %v1292 = vadd.f32 0.0, %v1291
          %v1293 = vpop.f32.mrf.mxu0
          %v1294 = vadd.f32 0.0, %v1293
          %1295 = vmatmul.bf16.gmra.mxu0 %v1147
          %v1296 = vpop.f32.mrf.mxu0
          %v1297 = vadd.f32 0.0, %v1296
          %v1298 = vpop.f32.mrf.mxu0
          %v1299 = vadd.f32 0.0, %v1298
          %1300 = vmatmul.bf16.gmra.mxu0 %v1149
          %v1301 = vpop.f32.mrf.mxu0
          %v1302 = vadd.f32 0.0, %v1301
          %v1303 = vpop.f32.mrf.mxu0
          %v1304 = vadd.f32 0.0, %v1303
          %1305 = vmatmul.bf16.gmra.mxu0 %v1151
          %v1306 = vpop.f32.mrf.mxu0
          %v1307 = vadd.f32 0.0, %v1306
          %v1308 = vpop.f32.mrf.mxu0
          %v1309 = vadd.f32 0.0, %v1308
          %1310 = vmatmul.bf16.gmra.mxu0 %v1153
          %v1311 = vpop.f32.mrf.mxu0
          %v1312 = vadd.f32 0.0, %v1311
          %v1313 = vpop.f32.mrf.mxu0
          %v1314 = vadd.f32 0.0, %v1313
          %1315 = vdwg.mxu0
          %1316 = vmatpush.bf16.msra.mxu0 %v1250
          %1317 = vmatpush.bf16.msra.mxu0 %v1249
          %1318 = vmatpush.bf16.msra.mxu0 %v1248
          %1319 = vmatpush.bf16.msra.mxu0 %v1247
          %1320 = vmatpush.bf16.msra.mxu0 %v1246
          %1321 = vmatpush.bf16.msra.mxu0 %v1245
          %1322 = vmatpush.bf16.msra.mxu0 %v1244
          %1323 = vmatpush.bf16.msra.mxu0 %v1243
          %1324 = vmatmul.bf16.gmra.mxu0 %v1140
          %v1325 = vpop.f32.mrf.mxu0
          %v1326 = vadd.f32 %v1277, %v1325
          %v1327 = vpop.f32.mrf.mxu0
          %v1328 = vadd.f32 %v1279, %v1327
          %1329 = vmatmul.bf16.gmra.mxu0 %v1142
          %v1330 = vpop.f32.mrf.mxu0
          %v1331 = vadd.f32 %v1282, %v1330
          %v1332 = vpop.f32.mrf.mxu0
          %v1333 = vadd.f32 %v1284, %v1332
          %1334 = vmatmul.bf16.gmra.mxu0 %v1144
          %v1335 = vpop.f32.mrf.mxu0
          %v1336 = vadd.f32 %v1287, %v1335
          %v1337 = vpop.f32.mrf.mxu0
          %v1338 = vadd.f32 %v1289, %v1337
          %1339 = vmatmul.bf16.gmra.mxu0 %v1146
          %v1340 = vpop.f32.mrf.mxu0
          %v1341 = vadd.f32 %v1292, %v1340
          %v1342 = vpop.f32.mrf.mxu0
          %v1343 = vadd.f32 %v1294, %v1342
          %1344 = vmatmul.bf16.gmra.mxu0 %v1148
          %v1345 = vpop.f32.mrf.mxu0
          %v1346 = vadd.f32 %v1297, %v1345
          %v1347 = vpop.f32.mrf.mxu0
          %v1348 = vadd.f32 %v1299, %v1347
          %1349 = vmatmul.bf16.gmra.mxu0 %v1150
          %v1350 = vpop.f32.mrf.mxu0
          %v1351 = vadd.f32 %v1302, %v1350
          %v1352 = vpop.f32.mrf.mxu0
          %v1353 = vadd.f32 %v1304, %v1352
          %1354 = vmatmul.bf16.gmra.mxu0 %v1152
          %v1355 = vpop.f32.mrf.mxu0
          %v1356 = vadd.f32 %v1307, %v1355
          %v1357 = vpop.f32.mrf.mxu0
          %v1358 = vadd.f32 %v1309, %v1357
          %1359 = vmatmul.bf16.gmra.mxu0 %v1154
          %v1360 = vpop.f32.mrf.mxu0
          %v1361 = vadd.f32 %v1312, %v1360
          %v1362 = vpop.f32.mrf.mxu0
          %v1363 = vadd.f32 %v1314, %v1362
          %1364 = vdwg.mxu0
          %v1365 = vmax.f32 %v1326, 0.0
          %v1366 = vmax.f32 %v1328, 0.0
          %v1367 = vmax.f32 %v1331, 0.0
          %v1368 = vmax.f32 %v1333, 0.0
          %v1369 = vmax.f32 %v1336, 0.0
          %v1370 = vmax.f32 %v1338, 0.0
          %v1371 = vmax.f32 %v1341, 0.0
          %v1372 = vmax.f32 %v1343, 0.0
          %v1373 = vmax.f32 %v1346, 0.0
          %v1374 = vmax.f32 %v1348, 0.0
          %v1375 = vmax.f32 %v1351, 0.0
          %v1376 = vmax.f32 %v1353, 0.0
          %v1377 = vmax.f32 %v1356, 0.0
          %v1378 = vmax.f32 %v1358, 0.0
          %v1379 = vmax.f32 %v1361, 0.0
          %v1380 = vmax.f32 %v1363, 0.0
          %s1381 = scalar_lea.vmem [#allocation3], %s452
          %1382 = vst [vmem:[%s1381] sm:$0xff] %v1365
          %1383 = vst [vmem:[%s1381 + $0x8] sm:$0xff] %v1366
          %1384 = vst [vmem:[%s1381 + $0x10] sm:$0xff] %v1367
          %1385 = vst [vmem:[%s1381 + $0x18] sm:$0xff] %v1368
          %1386 = vst [vmem:[%s1381 + $0x20] sm:$0xff] %v1369
          %1387 = vst [vmem:[%s1381 + $0x28] sm:$0xff] %v1370
          %1388 = vst [vmem:[%s1381 + $0x30] sm:$0xff] %v1371
          %1389 = vst [vmem:[%s1381 + $0x38] sm:$0xff] %v1372
          %1390 = vst [vmem:[%s1381 + $0x40] sm:$0xff] %v1373
          %1391 = vst [vmem:[%s1381 + $0x48] sm:$0xff] %v1374
          %1392 = vst [vmem:[%s1381 + $0x50] sm:$0xff] %v1375
          %1393 = vst [vmem:[%s1381 + $0x58] sm:$0xff] %v1376
          %1394 = vst [vmem:[%s1381 + $0x60] sm:$0xff] %v1377
          %1395 = vst [vmem:[%s1381 + $0x68] sm:$0xff] %v1378
          %1396 = vst [vmem:[%s1381 + $0x70] sm:$0xff] %v1379
          %1397 = vst [vmem:[%s1381 + $0x78] sm:$0xff] %v1380
        $region76: #{tpu_custom_call.1} parent=55 // pred_fallthru
          _
        %p1398 = scmp.eq.s32.totalorder %s29, 1
        %p1399 = pnand %p1398, %p454
        %p1400 = pneg %p1399
        // Predicated region
        $region77: #{tpu_custom_call.1} parent=55 // pred_check
          _
        $region78: #{tpu_custom_call.1} parent=55 // pred_check_branch
          %1402 = sbr.rel (%p1399) target = $region80
        $region79: #{tpu_custom_call.1} parent=55 // pred_region
          %v1403 = vld [vmem:[#allocation3] sm:$0xff]
          %v1404 = vld [vmem:[#allocation3 + $0x8] sm:$0xff]
          %v1405 = vld [vmem:[#allocation3 + $0x10] sm:$0xff]
          %v1406 = vld [vmem:[#allocation3 + $0x18] sm:$0xff]
          %v1407 = vld [vmem:[#allocation3 + $0x20] sm:$0xff]
          %v1408 = vld [vmem:[#allocation3 + $0x28] sm:$0xff]
          %v1409 = vld [vmem:[#allocation3 + $0x30] sm:$0xff]
          %v1410 = vld [vmem:[#allocation3 + $0x38] sm:$0xff]
          %v1411 = vld [vmem:[#allocation3 + $0x40] sm:$0xff]
          %v1412 = vld [vmem:[#allocation3 + $0x48] sm:$0xff]
          %v1413 = vld [vmem:[#allocation3 + $0x50] sm:$0xff]
          %v1414 = vld [vmem:[#allocation3 + $0x58] sm:$0xff]
          %v1415 = vld [vmem:[#allocation3 + $0x60] sm:$0xff]
          %v1416 = vld [vmem:[#allocation3 + $0x68] sm:$0xff]
          %v1417 = vld [vmem:[#allocation3 + $0x70] sm:$0xff]
          %v1418 = vld [vmem:[#allocation3 + $0x78] sm:$0xff]
          %v1419 = vld [vmem:[#allocation3 + $0x80] sm:$0xff]
          %v1420 = vld [vmem:[#allocation3 + $0x88] sm:$0xff]
          %v1421 = vld [vmem:[#allocation3 + $0x90] sm:$0xff]
          %v1422 = vld [vmem:[#allocation3 + $0x98] sm:$0xff]
          %v1423 = vld [vmem:[#allocation3 + $0xa0] sm:$0xff]
          %v1424 = vld [vmem:[#allocation3 + $0xa8] sm:$0xff]
          %v1425 = vld [vmem:[#allocation3 + $0xb0] sm:$0xff]
          %v1426 = vld [vmem:[#allocation3 + $0xb8] sm:$0xff]
          %v1427 = vld [vmem:[#allocation3 + $0xc0] sm:$0xff]
          %v1428 = vld [vmem:[#allocation3 + $0xc8] sm:$0xff]
          %v1429 = vld [vmem:[#allocation3 + $0xd0] sm:$0xff]
          %v1430 = vld [vmem:[#allocation3 + $0xd8] sm:$0xff]
          %v1431 = vld [vmem:[#allocation3 + $0xe0] sm:$0xff]
          %v1432 = vld [vmem:[#allocation3 + $0xe8] sm:$0xff]
          %v1433 = vld [vmem:[#allocation3 + $0xf0] sm:$0xff]
          %v1434 = vld [vmem:[#allocation3 + $0xf8] sm:$0xff]
          %v1435 = vld [vmem:[#allocation7] sm:$0xff]
          %v1436 = vld [vmem:[#allocation7 + $0x8] sm:$0xff]
          %v1437 = vld [vmem:[#allocation7 + $0x10] sm:$0xff]
          %v1438 = vld [vmem:[#allocation7 + $0x18] sm:$0xff]
          %v1439 = vld [vmem:[#allocation7 + $0x20] sm:$0xff]
          %v1440 = vld [vmem:[#allocation7 + $0x28] sm:$0xff]
          %v1441 = vld [vmem:[#allocation7 + $0x30] sm:$0xff]
          %v1442 = vld [vmem:[#allocation7 + $0x38] sm:$0xff]
          %v1443 = vld [vmem:[#allocation7 + $0x40] sm:$0xff]
          %v1444 = vld [vmem:[#allocation7 + $0x48] sm:$0xff]
          %v1445 = vld [vmem:[#allocation7 + $0x50] sm:$0xff]
          %v1446 = vld [vmem:[#allocation7 + $0x58] sm:$0xff]
          %v1447 = vld [vmem:[#allocation7 + $0x60] sm:$0xff]
          %v1448 = vld [vmem:[#allocation7 + $0x68] sm:$0xff]
          %v1449 = vld [vmem:[#allocation7 + $0x70] sm:$0xff]
          %v1450 = vld [vmem:[#allocation7 + $0x78] sm:$0xff]
          %v1451 = vld [vmem:[%s6] sm:$0x1]
          %v1453 = vperm.slane %v1451, 0
          %1455 = vmatpush.msra.mxu0 %v1450
          %1456 = vmatpush.msra.mxu0 %v1449
          %1457 = vmatpush.msra.mxu0 %v1448
          %1458 = vmatpush.msra.mxu0 %v1447
          %1459 = vmatpush.msra.mxu0 %v1446
          %1460 = vmatpush.msra.mxu0 %v1445
          %1461 = vmatpush.msra.mxu0 %v1444
          %1462 = vmatpush.msra.mxu0 %v1443
          %1463 = vmatpush.msra.mxu0 %v1442
          %1464 = vmatpush.msra.mxu0 %v1441
          %1465 = vmatpush.msra.mxu0 %v1440
          %1466 = vmatpush.msra.mxu0 %v1439
          %1467 = vmatpush.msra.mxu0 %v1438
          %1468 = vmatpush.msra.mxu0 %v1437
          %1469 = vmatpush.msra.mxu0 %v1436
          %1470 = vmatpush.msra.mxu0 %v1435
          %1471 = vmatmul.f32.gmra.mxu0 %v1403
          %v1472 = vpop.f32.mrf.mxu0
          %v1473 = vadd.f32 %v1453, %v1472
          %1474 = vmatmul.f32.gmra.mxu0 %v1404
          %v1475 = vpop.f32.mrf.mxu0
          %v1476 = vadd.f32 %v1453, %v1475
          %1477 = vmatmul.f32.gmra.mxu0 %v1405
          %v1478 = vpop.f32.mrf.mxu0
          %v1479 = vadd.f32 %v1453, %v1478
          %1480 = vmatmul.f32.gmra.mxu0 %v1406
          %v1481 = vpop.f32.mrf.mxu0
          %v1482 = vadd.f32 %v1453, %v1481
          %1483 = vmatmul.f32.gmra.mxu0 %v1407
          %v1484 = vpop.f32.mrf.mxu0
          %v1485 = vadd.f32 %v1453, %v1484
          %1486 = vmatmul.f32.gmra.mxu0 %v1408
          %v1487 = vpop.f32.mrf.mxu0
          %v1488 = vadd.f32 %v1453, %v1487
          %1489 = vmatmul.f32.gmra.mxu0 %v1409
          %v1490 = vpop.f32.mrf.mxu0
          %v1491 = vadd.f32 %v1453, %v1490
          %1492 = vmatmul.f32.gmra.mxu0 %v1410
          %v1493 = vpop.f32.mrf.mxu0
          %v1494 = vadd.f32 %v1453, %v1493
          %1495 = vmatmul.f32.gmra.mxu0 %v1411
          %v1496 = vpop.f32.mrf.mxu0
          %v1497 = vadd.f32 %v1453, %v1496
          %1498 = vmatmul.f32.gmra.mxu0 %v1412
          %v1499 = vpop.f32.mrf.mxu0
          %v1500 = vadd.f32 %v1453, %v1499
          %1501 = vmatmul.f32.gmra.mxu0 %v1413
          %v1502 = vpop.f32.mrf.mxu0
          %v1503 = vadd.f32 %v1453, %v1502
          %1504 = vmatmul.f32.gmra.mxu0 %v1414
          %v1505 = vpop.f32.mrf.mxu0
          %v1506 = vadd.f32 %v1453, %v1505
          %1507 = vmatmul.f32.gmra.mxu0 %v1415
          %v1508 = vpop.f32.mrf.mxu0
          %v1509 = vadd.f32 %v1453, %v1508
          %1510 = vmatmul.f32.gmra.mxu0 %v1416
          %v1511 = vpop.f32.mrf.mxu0
          %v1512 = vadd.f32 %v1453, %v1511
          %1513 = vmatmul.f32.gmra.mxu0 %v1417
          %v1514 = vpop.f32.mrf.mxu0
          %v1515 = vadd.f32 %v1453, %v1514
          %1516 = vmatmul.f32.gmra.mxu0 %v1418
          %v1517 = vpop.f32.mrf.mxu0
          %v1518 = vadd.f32 %v1453, %v1517
          %1519 = vmatmul.f32.gmra.mxu0 %v1419
          %v1520 = vpop.f32.mrf.mxu0
          %v1521 = vadd.f32 %v1453, %v1520
          %1522 = vmatmul.f32.gmra.mxu0 %v1420
          %v1523 = vpop.f32.mrf.mxu0
          %v1524 = vadd.f32 %v1453, %v1523
          %1525 = vmatmul.f32.gmra.mxu0 %v1421
          %v1526 = vpop.f32.mrf.mxu0
          %v1527 = vadd.f32 %v1453, %v1526
          %1528 = vmatmul.f32.gmra.mxu0 %v1422
          %v1529 = vpop.f32.mrf.mxu0
          %v1530 = vadd.f32 %v1453, %v1529
          %1531 = vmatmul.f32.gmra.mxu0 %v1423
          %v1532 = vpop.f32.mrf.mxu0
          %v1533 = vadd.f32 %v1453, %v1532
          %1534 = vmatmul.f32.gmra.mxu0 %v1424
          %v1535 = vpop.f32.mrf.mxu0
          %v1536 = vadd.f32 %v1453, %v1535
          %1537 = vmatmul.f32.gmra.mxu0 %v1425
          %v1538 = vpop.f32.mrf.mxu0
          %v1539 = vadd.f32 %v1453, %v1538
          %1540 = vmatmul.f32.gmra.mxu0 %v1426
          %v1541 = vpop.f32.mrf.mxu0
          %v1542 = vadd.f32 %v1453, %v1541
          %1543 = vmatmul.f32.gmra.mxu0 %v1427
          %v1544 = vpop.f32.mrf.mxu0
          %v1545 = vadd.f32 %v1453, %v1544
          %1546 = vmatmul.f32.gmra.mxu0 %v1428
          %v1547 = vpop.f32.mrf.mxu0
          %v1548 = vadd.f32 %v1453, %v1547
          %1549 = vmatmul.f32.gmra.mxu0 %v1429
          %v1550 = vpop.f32.mrf.mxu0
          %v1551 = vadd.f32 %v1453, %v1550
          %1552 = vmatmul.f32.gmra.mxu0 %v1430
          %v1553 = vpop.f32.mrf.mxu0
          %v1554 = vadd.f32 %v1453, %v1553
          %1555 = vmatmul.f32.gmra.mxu0 %v1431
          %v1556 = vpop.f32.mrf.mxu0
          %v1557 = vadd.f32 %v1453, %v1556
          %1558 = vmatmul.f32.gmra.mxu0 %v1432
          %v1559 = vpop.f32.mrf.mxu0
          %v1560 = vadd.f32 %v1453, %v1559
          %1561 = vmatmul.f32.gmra.mxu0 %v1433
          %v1562 = vpop.f32.mrf.mxu0
          %v1563 = vadd.f32 %v1453, %v1562
          %1564 = vmatmul.f32.gmra.mxu0 %v1434
          %v1565 = vpop.f32.mrf.mxu0
          %v1566 = vadd.f32 %v1453, %v1565
          %1567 = vdwg.mxu0
          %v1568 = vld [vmem:[%s1] sm:$0xff]
          %v1569 = vld [vmem:[%s1 + $0x8] sm:$0xff]
          %v1570 = vld [vmem:[%s1 + $0x10] sm:$0xff]
          %v1571 = vld [vmem:[%s1 + $0x18] sm:$0xff]
          %v1572 = vld [vmem:[%s1 + $0x20] sm:$0xff]
          %v1573 = vld [vmem:[%s1 + $0x28] sm:$0xff]
          %v1574 = vld [vmem:[%s1 + $0x30] sm:$0xff]
          %v1575 = vld [vmem:[%s1 + $0x38] sm:$0xff]
          %v1576 = vld [vmem:[%s1 + $0x40] sm:$0xff]
          %v1577 = vld [vmem:[%s1 + $0x48] sm:$0xff]
          %v1578 = vld [vmem:[%s1 + $0x50] sm:$0xff]
          %v1579 = vld [vmem:[%s1 + $0x58] sm:$0xff]
          %v1580 = vld [vmem:[%s1 + $0x60] sm:$0xff]
          %v1581 = vld [vmem:[%s1 + $0x68] sm:$0xff]
          %v1582 = vld [vmem:[%s1 + $0x70] sm:$0xff]
          %v1583 = vld [vmem:[%s1 + $0x78] sm:$0xff]
          %v1584 = vld [vmem:[%s1 + $0x80] sm:$0xff]
          %v1585 = vld [vmem:[%s1 + $0x88] sm:$0xff]
          %v1586 = vld [vmem:[%s1 + $0x90] sm:$0xff]
          %v1587 = vld [vmem:[%s1 + $0x98] sm:$0xff]
          %v1588 = vld [vmem:[%s1 + $0xa0] sm:$0xff]
          %v1589 = vld [vmem:[%s1 + $0xa8] sm:$0xff]
          %v1590 = vld [vmem:[%s1 + $0xb0] sm:$0xff]
          %v1591 = vld [vmem:[%s1 + $0xb8] sm:$0xff]
          %v1592 = vld [vmem:[%s1 + $0xc0] sm:$0xff]
          %v1593 = vld [vmem:[%s1 + $0xc8] sm:$0xff]
          %v1594 = vld [vmem:[%s1 + $0xd0] sm:$0xff]
          %v1595 = vld [vmem:[%s1 + $0xd8] sm:$0xff]
          %v1596 = vld [vmem:[%s1 + $0xe0] sm:$0xff]
          %v1597 = vld [vmem:[%s1 + $0xe8] sm:$0xff]
          %v1598 = vld [vmem:[%s1 + $0xf0] sm:$0xff]
          %v1599 = vld [vmem:[%s1 + $0xf8] sm:$0xff]
          %vm1600 = vcmp.gt.f32.partialorder %v1568, 0.0
          %vm1601 = vcmp.gt.f32.partialorder %v1569, 0.0
          %vm1602 = vcmp.gt.f32.partialorder %v1570, 0.0
          %vm1603 = vcmp.gt.f32.partialorder %v1571, 0.0
          %vm1604 = vcmp.gt.f32.partialorder %v1572, 0.0
          %vm1605 = vcmp.gt.f32.partialorder %v1573, 0.0
          %vm1606 = vcmp.gt.f32.partialorder %v1574, 0.0
          %vm1607 = vcmp.gt.f32.partialorder %v1575, 0.0
          %vm1608 = vcmp.gt.f32.partialorder %v1576, 0.0
          %vm1609 = vcmp.gt.f32.partialorder %v1577, 0.0
          %vm1610 = vcmp.gt.f32.partialorder %v1578, 0.0
          %vm1611 = vcmp.gt.f32.partialorder %v1579, 0.0
          %vm1612 = vcmp.gt.f32.partialorder %v1580, 0.0
          %vm1613 = vcmp.gt.f32.partialorder %v1581, 0.0
          %vm1614 = vcmp.gt.f32.partialorder %v1582, 0.0
          %vm1615 = vcmp.gt.f32.partialorder %v1583, 0.0
          %vm1616 = vcmp.gt.f32.partialorder %v1584, 0.0
          %vm1617 = vcmp.gt.f32.partialorder %v1585, 0.0
          %vm1618 = vcmp.gt.f32.partialorder %v1586, 0.0
          %vm1619 = vcmp.gt.f32.partialorder %v1587, 0.0
          %vm1620 = vcmp.gt.f32.partialorder %v1588, 0.0
          %vm1621 = vcmp.gt.f32.partialorder %v1589, 0.0
          %vm1622 = vcmp.gt.f32.partialorder %v1590, 0.0
          %vm1623 = vcmp.gt.f32.partialorder %v1591, 0.0
          %vm1624 = vcmp.gt.f32.partialorder %v1592, 0.0
          %vm1625 = vcmp.gt.f32.partialorder %v1593, 0.0
          %vm1626 = vcmp.gt.f32.partialorder %v1594, 0.0
          %vm1627 = vcmp.gt.f32.partialorder %v1595, 0.0
          %vm1628 = vcmp.gt.f32.partialorder %v1596, 0.0
          %vm1629 = vcmp.gt.f32.partialorder %v1597, 0.0
          %vm1630 = vcmp.gt.f32.partialorder %v1598, 0.0
          %vm1631 = vcmp.gt.f32.partialorder %v1599, 0.0
          %v1632 = vsel %vm1600, %v1568, 1.0
          %v1633 = vsel %vm1601, %v1569, 1.0
          %v1634 = vsel %vm1602, %v1570, 1.0
          %v1635 = vsel %vm1603, %v1571, 1.0
          %v1636 = vsel %vm1604, %v1572, 1.0
          %v1637 = vsel %vm1605, %v1573, 1.0
          %v1638 = vsel %vm1606, %v1574, 1.0
          %v1639 = vsel %vm1607, %v1575, 1.0
          %v1640 = vsel %vm1608, %v1576, 1.0
          %v1641 = vsel %vm1609, %v1577, 1.0
          %v1642 = vsel %vm1610, %v1578, 1.0
          %v1643 = vsel %vm1611, %v1579, 1.0
          %v1644 = vsel %vm1612, %v1580, 1.0
          %v1645 = vsel %vm1613, %v1581, 1.0
          %v1646 = vsel %vm1614, %v1582, 1.0
          %v1647 = vsel %vm1615, %v1583, 1.0
          %v1648 = vsel %vm1616, %v1584, 1.0
          %v1649 = vsel %vm1617, %v1585, 1.0
          %v1650 = vsel %vm1618, %v1586, 1.0
          %v1651 = vsel %vm1619, %v1587, 1.0
          %v1652 = vsel %vm1620, %v1588, 1.0
          %v1653 = vsel %vm1621, %v1589, 1.0
          %v1654 = vsel %vm1622, %v1590, 1.0
          %v1655 = vsel %vm1623, %v1591, 1.0
          %v1656 = vsel %vm1624, %v1592, 1.0
          %v1657 = vsel %vm1625, %v1593, 1.0
          %v1658 = vsel %vm1626, %v1594, 1.0
          %v1659 = vsel %vm1627, %v1595, 1.0
          %v1660 = vsel %vm1628, %v1596, 1.0
          %v1661 = vsel %vm1629, %v1597, 1.0
          %v1662 = vsel %vm1630, %v1598, 1.0
          %v1663 = vsel %vm1631, %v1599, 1.0
          %v1664 = vrcp.pop %v1632
          %v1665 = vrcp.pop %v1633
          %v1666 = vrcp.pop %v1634
          %v1667 = vrcp.pop %v1635
          %v1668 = vrcp.pop %v1636
          %v1669 = vrcp.pop %v1637
          %v1670 = vrcp.pop %v1638
          %v1671 = vrcp.pop %v1639
          %v1672 = vrcp.pop %v1640
          %v1673 = vrcp.pop %v1641
          %v1674 = vrcp.pop %v1642
          %v1675 = vrcp.pop %v1643
          %v1676 = vrcp.pop %v1644
          %v1677 = vrcp.pop %v1645
          %v1678 = vrcp.pop %v1646
          %v1679 = vrcp.pop %v1647
          %v1680 = vrcp.pop %v1648
          %v1681 = vrcp.pop %v1649
          %v1682 = vrcp.pop %v1650
          %v1683 = vrcp.pop %v1651
          %v1684 = vrcp.pop %v1652
          %v1685 = vrcp.pop %v1653
          %v1686 = vrcp.pop %v1654
          %v1687 = vrcp.pop %v1655
          %v1688 = vrcp.pop %v1656
          %v1689 = vrcp.pop %v1657
          %v1690 = vrcp.pop %v1658
          %v1691 = vrcp.pop %v1659
          %v1692 = vrcp.pop %v1660
          %v1693 = vrcp.pop %v1661
          %v1694 = vrcp.pop %v1662
          %v1695 = vrcp.pop %v1663
          %v1696 = vsel %vm1600, %v1664, 0.0
          %v1697 = vsel %vm1601, %v1665, 0.0
          %v1698 = vsel %vm1602, %v1666, 0.0
          %v1699 = vsel %vm1603, %v1667, 0.0
          %v1700 = vsel %vm1604, %v1668, 0.0
          %v1701 = vsel %vm1605, %v1669, 0.0
          %v1702 = vsel %vm1606, %v1670, 0.0
          %v1703 = vsel %vm1607, %v1671, 0.0
          %v1704 = vsel %vm1608, %v1672, 0.0
          %v1705 = vsel %vm1609, %v1673, 0.0
          %v1706 = vsel %vm1610, %v1674, 0.0
          %v1707 = vsel %vm1611, %v1675, 0.0
          %v1708 = vsel %vm1612, %v1676, 0.0
          %v1709 = vsel %vm1613, %v1677, 0.0
          %v1710 = vsel %vm1614, %v1678, 0.0
          %v1711 = vsel %vm1615, %v1679, 0.0
          %v1712 = vsel %vm1616, %v1680, 0.0
          %v1713 = vsel %vm1617, %v1681, 0.0
          %v1714 = vsel %vm1618, %v1682, 0.0
          %v1715 = vsel %vm1619, %v1683, 0.0
          %v1716 = vsel %vm1620, %v1684, 0.0
          %v1717 = vsel %vm1621, %v1685, 0.0
          %v1718 = vsel %vm1622, %v1686, 0.0
          %v1719 = vsel %vm1623, %v1687, 0.0
          %v1720 = vsel %vm1624, %v1688, 0.0
          %v1721 = vsel %vm1625, %v1689, 0.0
          %v1722 = vsel %vm1626, %v1690, 0.0
          %v1723 = vsel %vm1627, %v1691, 0.0
          %v1724 = vsel %vm1628, %v1692, 0.0
          %v1725 = vsel %vm1629, %v1693, 0.0
          %v1726 = vsel %vm1630, %v1694, 0.0
          %v1727 = vsel %vm1631, %v1695, 0.0
          %1729 = vset.pattern.permute.xlu0 0
          %1730 = vperm.xlu0 %1729, %v1696
          %v1731 = vpop.permute.xlu0 %1730
          %1734 = vset.pattern.permute.xlu0 0
          %1735 = vperm.xlu0 %1734, %v1697
          %v1736 = vpop.permute.xlu0 %1735
          %1739 = vset.pattern.permute.xlu0 0
          %1740 = vperm.xlu0 %1739, %v1698
          %v1741 = vpop.permute.xlu0 %1740
          %1744 = vset.pattern.permute.xlu0 0
          %1745 = vperm.xlu0 %1744, %v1699
          %v1746 = vpop.permute.xlu0 %1745
          %1749 = vset.pattern.permute.xlu0 0
          %1750 = vperm.xlu0 %1749, %v1700
          %v1751 = vpop.permute.xlu0 %1750
          %1754 = vset.pattern.permute.xlu0 0
          %1755 = vperm.xlu0 %1754, %v1701
          %v1756 = vpop.permute.xlu0 %1755
          %1759 = vset.pattern.permute.xlu0 0
          %1760 = vperm.xlu0 %1759, %v1702
          %v1761 = vpop.permute.xlu0 %1760
          %1764 = vset.pattern.permute.xlu0 0
          %1765 = vperm.xlu0 %1764, %v1703
          %v1766 = vpop.permute.xlu0 %1765
          %1769 = vset.pattern.permute.xlu0 0
          %1770 = vperm.xlu0 %1769, %v1704
          %v1771 = vpop.permute.xlu0 %1770
          %1774 = vset.pattern.permute.xlu0 0
          %1775 = vperm.xlu0 %1774, %v1705
          %v1776 = vpop.permute.xlu0 %1775
          %1779 = vset.pattern.permute.xlu0 0
          %1780 = vperm.xlu0 %1779, %v1706
          %v1781 = vpop.permute.xlu0 %1780
          %1784 = vset.pattern.permute.xlu0 0
          %1785 = vperm.xlu0 %1784, %v1707
          %v1786 = vpop.permute.xlu0 %1785
          %1789 = vset.pattern.permute.xlu0 0
          %1790 = vperm.xlu0 %1789, %v1708
          %v1791 = vpop.permute.xlu0 %1790
          %1794 = vset.pattern.permute.xlu0 0
          %1795 = vperm.xlu0 %1794, %v1709
          %v1796 = vpop.permute.xlu0 %1795
          %1799 = vset.pattern.permute.xlu0 0
          %1800 = vperm.xlu0 %1799, %v1710
          %v1801 = vpop.permute.xlu0 %1800
          %1804 = vset.pattern.permute.xlu0 0
          %1805 = vperm.xlu0 %1804, %v1711
          %v1806 = vpop.permute.xlu0 %1805
          %1809 = vset.pattern.permute.xlu0 0
          %1810 = vperm.xlu0 %1809, %v1712
          %v1811 = vpop.permute.xlu0 %1810
          %1814 = vset.pattern.permute.xlu0 0
          %1815 = vperm.xlu0 %1814, %v1713
          %v1816 = vpop.permute.xlu0 %1815
          %1819 = vset.pattern.permute.xlu0 0
          %1820 = vperm.xlu0 %1819, %v1714
          %v1821 = vpop.permute.xlu0 %1820
          %1824 = vset.pattern.permute.xlu0 0
          %1825 = vperm.xlu0 %1824, %v1715
          %v1826 = vpop.permute.xlu0 %1825
          %1829 = vset.pattern.permute.xlu0 0
          %1830 = vperm.xlu0 %1829, %v1716
          %v1831 = vpop.permute.xlu0 %1830
          %1834 = vset.pattern.permute.xlu0 0
          %1835 = vperm.xlu0 %1834, %v1717
          %v1836 = vpop.permute.xlu0 %1835
          %1839 = vset.pattern.permute.xlu0 0
          %1840 = vperm.xlu0 %1839, %v1718
          %v1841 = vpop.permute.xlu0 %1840
          %1844 = vset.pattern.permute.xlu0 0
          %1845 = vperm.xlu0 %1844, %v1719
          %v1846 = vpop.permute.xlu0 %1845
          %1849 = vset.pattern.permute.xlu0 0
          %1850 = vperm.xlu0 %1849, %v1720
          %v1851 = vpop.permute.xlu0 %1850
          %1854 = vset.pattern.permute.xlu0 0
          %1855 = vperm.xlu0 %1854, %v1721
          %v1856 = vpop.permute.xlu0 %1855
          %1859 = vset.pattern.permute.xlu0 0
          %1860 = vperm.xlu0 %1859, %v1722
          %v1861 = vpop.permute.xlu0 %1860
          %1864 = vset.pattern.permute.xlu0 0
          %1865 = vperm.xlu0 %1864, %v1723
          %v1866 = vpop.permute.xlu0 %1865
          %1869 = vset.pattern.permute.xlu0 0
          %1870 = vperm.xlu0 %1869, %v1724
          %v1871 = vpop.permute.xlu0 %1870
          %1874 = vset.pattern.permute.xlu0 0
          %1875 = vperm.xlu0 %1874, %v1725
          %v1876 = vpop.permute.xlu0 %1875
          %1879 = vset.pattern.permute.xlu0 0
          %1880 = vperm.xlu0 %1879, %v1726
          %v1881 = vpop.permute.xlu0 %1880
          %1884 = vset.pattern.permute.xlu0 0
          %1885 = vperm.xlu0 %1884, %v1727
          %v1886 = vpop.permute.xlu0 %1885
          %v1888 = vmul.f32 %v1473, %v1731
          %v1889 = vmul.f32 %v1476, %v1736
          %v1890 = vmul.f32 %v1479, %v1741
          %v1891 = vmul.f32 %v1482, %v1746
          %v1892 = vmul.f32 %v1485, %v1751
          %v1893 = vmul.f32 %v1488, %v1756
          %v1894 = vmul.f32 %v1491, %v1761
          %v1895 = vmul.f32 %v1494, %v1766
          %v1896 = vmul.f32 %v1497, %v1771
          %v1897 = vmul.f32 %v1500, %v1776
          %v1898 = vmul.f32 %v1503, %v1781
          %v1899 = vmul.f32 %v1506, %v1786
          %v1900 = vmul.f32 %v1509, %v1791
          %v1901 = vmul.f32 %v1512, %v1796
          %v1902 = vmul.f32 %v1515, %v1801
          %v1903 = vmul.f32 %v1518, %v1806
          %v1904 = vmul.f32 %v1521, %v1811
          %v1905 = vmul.f32 %v1524, %v1816
          %v1906 = vmul.f32 %v1527, %v1821
          %v1907 = vmul.f32 %v1530, %v1826
          %v1908 = vmul.f32 %v1533, %v1831
          %v1909 = vmul.f32 %v1536, %v1836
          %v1910 = vmul.f32 %v1539, %v1841
          %v1911 = vmul.f32 %v1542, %v1846
          %v1912 = vmul.f32 %v1545, %v1851
          %v1913 = vmul.f32 %v1548, %v1856
          %v1914 = vmul.f32 %v1551, %v1861
          %v1915 = vmul.f32 %v1554, %v1866
          %v1916 = vmul.f32 %v1557, %v1871
          %v1917 = vmul.f32 %v1560, %v1876
          %v1918 = vmul.f32 %v1563, %v1881
          %v1919 = vmul.f32 %v1566, %v1886
          %v1920 = vpack.c.bf16 %v1888, %v1888
          %v1921 = vpack.c.bf16 %v1889, %v1889
          %v1922 = vpack.c.bf16 %v1890, %v1890
          %v1923 = vpack.c.bf16 %v1891, %v1891
          %v1924 = vpack.c.bf16 %v1892, %v1892
          %v1925 = vpack.c.bf16 %v1893, %v1893
          %v1926 = vpack.c.bf16 %v1894, %v1894
          %v1927 = vpack.c.bf16 %v1895, %v1895
          %v1928 = vpack.c.bf16 %v1896, %v1896
          %v1929 = vpack.c.bf16 %v1897, %v1897
          %v1930 = vpack.c.bf16 %v1898, %v1898
          %v1931 = vpack.c.bf16 %v1899, %v1899
          %v1932 = vpack.c.bf16 %v1900, %v1900
          %v1933 = vpack.c.bf16 %v1901, %v1901
          %v1934 = vpack.c.bf16 %v1902, %v1902
          %v1935 = vpack.c.bf16 %v1903, %v1903
          %v1936 = vpack.c.bf16 %v1904, %v1904
          %v1937 = vpack.c.bf16 %v1905, %v1905
          %v1938 = vpack.c.bf16 %v1906, %v1906
          %v1939 = vpack.c.bf16 %v1907, %v1907
          %v1940 = vpack.c.bf16 %v1908, %v1908
          %v1941 = vpack.c.bf16 %v1909, %v1909
          %v1942 = vpack.c.bf16 %v1910, %v1910
          %v1943 = vpack.c.bf16 %v1911, %v1911
          %v1944 = vpack.c.bf16 %v1912, %v1912
          %v1945 = vpack.c.bf16 %v1913, %v1913
          %v1946 = vpack.c.bf16 %v1914, %v1914
          %v1947 = vpack.c.bf16 %v1915, %v1915
          %v1948 = vpack.c.bf16 %v1916, %v1916
          %v1949 = vpack.c.bf16 %v1917, %v1917
          %v1950 = vpack.c.bf16 %v1918, %v1918
          %v1951 = vpack.c.bf16 %v1919, %v1919
          %1952 = vst [vmem:[#allocation2] sm:$0xf] %v1920
          %1953 = vst [vmem:[#allocation2 + $0x4] sm:$0xf] %v1921
          %1954 = vst [vmem:[#allocation2 + $0x8] sm:$0xf] %v1922
          %1955 = vst [vmem:[#allocation2 + $0xc] sm:$0xf] %v1923
          %1956 = vst [vmem:[#allocation2 + $0x10] sm:$0xf] %v1924
          %1957 = vst [vmem:[#allocation2 + $0x14] sm:$0xf] %v1925
          %1958 = vst [vmem:[#allocation2 + $0x18] sm:$0xf] %v1926
          %1959 = vst [vmem:[#allocation2 + $0x1c] sm:$0xf] %v1927
          %1960 = vst [vmem:[#allocation2 + $0x20] sm:$0xf] %v1928
          %1961 = vst [vmem:[#allocation2 + $0x24] sm:$0xf] %v1929
          %1962 = vst [vmem:[#allocation2 + $0x28] sm:$0xf] %v1930
          %1963 = vst [vmem:[#allocation2 + $0x2c] sm:$0xf] %v1931
          %1964 = vst [vmem:[#allocation2 + $0x30] sm:$0xf] %v1932
          %1965 = vst [vmem:[#allocation2 + $0x34] sm:$0xf] %v1933
          %1966 = vst [vmem:[#allocation2 + $0x38] sm:$0xf] %v1934
          %1967 = vst [vmem:[#allocation2 + $0x3c] sm:$0xf] %v1935
          %1968 = vst [vmem:[#allocation2 + $0x40] sm:$0xf] %v1936
          %1969 = vst [vmem:[#allocation2 + $0x44] sm:$0xf] %v1937
          %1970 = vst [vmem:[#allocation2 + $0x48] sm:$0xf] %v1938
          %1971 = vst [vmem:[#allocation2 + $0x4c] sm:$0xf] %v1939
          %1972 = vst [vmem:[#allocation2 + $0x50] sm:$0xf] %v1940
          %1973 = vst [vmem:[#allocation2 + $0x54] sm:$0xf] %v1941
          %1974 = vst [vmem:[#allocation2 + $0x58] sm:$0xf] %v1942
          %1975 = vst [vmem:[#allocation2 + $0x5c] sm:$0xf] %v1943
          %1976 = vst [vmem:[#allocation2 + $0x60] sm:$0xf] %v1944
          %1977 = vst [vmem:[#allocation2 + $0x64] sm:$0xf] %v1945
          %1978 = vst [vmem:[#allocation2 + $0x68] sm:$0xf] %v1946
          %1979 = vst [vmem:[#allocation2 + $0x6c] sm:$0xf] %v1947
          %1980 = vst [vmem:[#allocation2 + $0x70] sm:$0xf] %v1948
          %1981 = vst [vmem:[#allocation2 + $0x74] sm:$0xf] %v1949
          %1982 = vst [vmem:[#allocation2 + $0x78] sm:$0xf] %v1950
          %1983 = vst [vmem:[#allocation2 + $0x7c] sm:$0xf] %v1951
        $region80: #{tpu_custom_call.1} parent=55 // pred_fallthru
          _
        // Predicated region
        $region81: #{tpu_custom_call.1} parent=55 // pred_check
          %p1984 = pneg %p1398
        $region82: #{tpu_custom_call.1} parent=55 // pred_check_branch
          %1986 = sbr.rel (%p1984) target = $region84
        $region83: #{tpu_custom_call.1} parent=55 // pred_region
          %v1987 = vld [vmem:[%s390] sm:$0xff]
          %v1988 = vld [vmem:[%s390 + $0x8] sm:$0xff]
          %v1989 = vld [vmem:[%s390 + $0x10] sm:$0xff]
          %v1990 = vld [vmem:[%s390 + $0x18] sm:$0xff]
          %v1991 = vld [vmem:[%s390 + $0x20] sm:$0xff]
          %v1992 = vld [vmem:[%s390 + $0x28] sm:$0xff]
          %v1993 = vld [vmem:[%s390 + $0x30] sm:$0xff]
          %v1994 = vld [vmem:[%s390 + $0x38] sm:$0xff]
          %v1995 = vld [vmem:[%s390 + $0x40] sm:$0xff]
          %v1996 = vld [vmem:[%s390 + $0x48] sm:$0xff]
          %v1997 = vld [vmem:[%s390 + $0x50] sm:$0xff]
          %v1998 = vld [vmem:[%s390 + $0x58] sm:$0xff]
          %v1999 = vld [vmem:[%s390 + $0x60] sm:$0xff]
          %v2000 = vld [vmem:[%s390 + $0x68] sm:$0xff]
          %v2001 = vld [vmem:[%s390 + $0x70] sm:$0xff]
          %v2002 = vld [vmem:[%s390 + $0x78] sm:$0xff]
          %v2003 = vld [vmem:[#allocation2] sm:$0xf]
          %v2004 = vld [vmem:[#allocation2 + $0x4] sm:$0xf]
          %v2005 = vld [vmem:[#allocation2 + $0x8] sm:$0xf]
          %v2006 = vld [vmem:[#allocation2 + $0xc] sm:$0xf]
          %v2007 = vld [vmem:[#allocation2 + $0x10] sm:$0xf]
          %v2008 = vld [vmem:[#allocation2 + $0x14] sm:$0xf]
          %v2009 = vld [vmem:[#allocation2 + $0x18] sm:$0xf]
          %v2010 = vld [vmem:[#allocation2 + $0x1c] sm:$0xf]
          %v2011 = vld [vmem:[#allocation2 + $0x20] sm:$0xf]
          %v2012 = vld [vmem:[#allocation2 + $0x24] sm:$0xf]
          %v2013 = vld [vmem:[#allocation2 + $0x28] sm:$0xf]
          %v2014 = vld [vmem:[#allocation2 + $0x2c] sm:$0xf]
          %v2015 = vld [vmem:[#allocation2 + $0x30] sm:$0xf]
          %v2016 = vld [vmem:[#allocation2 + $0x34] sm:$0xf]
          %v2017 = vld [vmem:[#allocation2 + $0x38] sm:$0xf]
          %v2018 = vld [vmem:[#allocation2 + $0x3c] sm:$0xf]
          %v2019 = vld [vmem:[#allocation2 + $0x40] sm:$0xf]
          %v2020 = vld [vmem:[#allocation2 + $0x44] sm:$0xf]
          %v2021 = vld [vmem:[#allocation2 + $0x48] sm:$0xf]
          %v2022 = vld [vmem:[#allocation2 + $0x4c] sm:$0xf]
          %v2023 = vld [vmem:[#allocation2 + $0x50] sm:$0xf]
          %v2024 = vld [vmem:[#allocation2 + $0x54] sm:$0xf]
          %v2025 = vld [vmem:[#allocation2 + $0x58] sm:$0xf]
          %v2026 = vld [vmem:[#allocation2 + $0x5c] sm:$0xf]
          %v2027 = vld [vmem:[#allocation2 + $0x60] sm:$0xf]
          %v2028 = vld [vmem:[#allocation2 + $0x64] sm:$0xf]
          %v2029 = vld [vmem:[#allocation2 + $0x68] sm:$0xf]
          %v2030 = vld [vmem:[#allocation2 + $0x6c] sm:$0xf]
          %v2031 = vld [vmem:[#allocation2 + $0x70] sm:$0xf]
          %v2032 = vld [vmem:[#allocation2 + $0x74] sm:$0xf]
          %v2033 = vld [vmem:[#allocation2 + $0x78] sm:$0xf]
          %v2034 = vld [vmem:[#allocation2 + $0x7c] sm:$0xf]
          %v2051 = vunpack.c.l.b16 %v1987
          %v2052 = vunpack.c.h.b16 %v1987
          %v2053 = vunpack.c.l.b16 %v1988
          %v2054 = vunpack.c.h.b16 %v1988
          %v2055 = vunpack.c.l.b16 %v1989
          %v2056 = vunpack.c.h.b16 %v1989
          %v2057 = vunpack.c.l.b16 %v1990
          %v2058 = vunpack.c.h.b16 %v1990
          %v2059 = vunpack.c.l.b16 %v1991
          %v2060 = vunpack.c.h.b16 %v1991
          %v2061 = vunpack.c.l.b16 %v1992
          %v2062 = vunpack.c.h.b16 %v1992
          %v2063 = vunpack.c.l.b16 %v1993
          %v2064 = vunpack.c.h.b16 %v1993
          %v2065 = vunpack.c.l.b16 %v1994
          %v2066 = vunpack.c.h.b16 %v1994
          %v2067 = vunpack.c.l.b16 %v1995
          %v2068 = vunpack.c.h.b16 %v1995
          %v2069 = vunpack.c.l.b16 %v1996
          %v2070 = vunpack.c.h.b16 %v1996
          %v2071 = vunpack.c.l.b16 %v1997
          %v2072 = vunpack.c.h.b16 %v1997
          %v2073 = vunpack.c.l.b16 %v1998
          %v2074 = vunpack.c.h.b16 %v1998
          %v2075 = vunpack.c.l.b16 %v1999
          %v2076 = vunpack.c.h.b16 %v1999
          %v2077 = vunpack.c.l.b16 %v2000
          %v2078 = vunpack.c.h.b16 %v2000
          %v2079 = vunpack.c.l.b16 %v2001
          %v2080 = vunpack.c.h.b16 %v2001
          %v2081 = vunpack.c.l.b16 %v2002
          %v2082 = vunpack.c.h.b16 %v2002
          %v2083 = vpack.c.b16 %v2053, %v2051
          %v2084 = vpack.c.b16 %v2054, %v2052
          %v2085 = vpack.c.b16 %v2057, %v2055
          %v2086 = vpack.c.b16 %v2058, %v2056
          %v2087 = vpack.c.b16 %v2061, %v2059
          %v2088 = vpack.c.b16 %v2062, %v2060
          %v2089 = vpack.c.b16 %v2065, %v2063
          %v2090 = vpack.c.b16 %v2066, %v2064
          %v2091 = vpack.c.b16 %v2069, %v2067
          %v2092 = vpack.c.b16 %v2070, %v2068
          %v2093 = vpack.c.b16 %v2073, %v2071
          %v2094 = vpack.c.b16 %v2074, %v2072
          %v2095 = vpack.c.b16 %v2077, %v2075
          %v2096 = vpack.c.b16 %v2078, %v2076
          %v2097 = vpack.c.b16 %v2081, %v2079
          %v2098 = vpack.c.b16 %v2082, %v2080
          %v2147 = vunpack.c.l.b16 %v2003
          %v2148 = vunpack.c.l.b16 %v2004
          %v2149 = vunpack.c.l.b16 %v2005
          %v2150 = vunpack.c.l.b16 %v2006
          %v2151 = vunpack.c.l.b16 %v2007
          %v2152 = vunpack.c.l.b16 %v2008
          %v2153 = vunpack.c.l.b16 %v2009
          %v2154 = vunpack.c.l.b16 %v2010
          %v2155 = vunpack.c.l.b16 %v2011
          %v2156 = vunpack.c.l.b16 %v2012
          %v2157 = vunpack.c.l.b16 %v2013
          %v2158 = vunpack.c.l.b16 %v2014
          %v2159 = vunpack.c.l.b16 %v2015
          %v2160 = vunpack.c.l.b16 %v2016
          %v2161 = vunpack.c.l.b16 %v2017
          %v2162 = vunpack.c.l.b16 %v2018
          %v2163 = vunpack.c.l.b16 %v2019
          %v2164 = vunpack.c.l.b16 %v2020
          %v2165 = vunpack.c.l.b16 %v2021
          %v2166 = vunpack.c.l.b16 %v2022
          %v2167 = vunpack.c.l.b16 %v2023
          %v2168 = vunpack.c.l.b16 %v2024
          %v2169 = vunpack.c.l.b16 %v2025
          %v2170 = vunpack.c.l.b16 %v2026
          %v2171 = vunpack.c.l.b16 %v2027
          %v2172 = vunpack.c.l.b16 %v2028
          %v2173 = vunpack.c.l.b16 %v2029
          %v2174 = vunpack.c.l.b16 %v2030
          %v2175 = vunpack.c.l.b16 %v2031
          %v2176 = vunpack.c.l.b16 %v2032
          %v2177 = vunpack.c.l.b16 %v2033
          %v2178 = vunpack.c.l.b16 %v2034
          %v2179 = vpack.c.b16 %v2148, %v2147
          %v2180 = vpack.c.b16 %v2150, %v2149
          %v2181 = vpack.c.b16 %v2152, %v2151
          %v2182 = vpack.c.b16 %v2154, %v2153
          %v2183 = vpack.c.b16 %v2156, %v2155
          %v2184 = vpack.c.b16 %v2158, %v2157
          %v2185 = vpack.c.b16 %v2160, %v2159
          %v2186 = vpack.c.b16 %v2162, %v2161
          %v2187 = vpack.c.b16 %v2164, %v2163
          %v2188 = vpack.c.b16 %v2166, %v2165
          %v2189 = vpack.c.b16 %v2168, %v2167
          %v2190 = vpack.c.b16 %v2170, %v2169
          %v2191 = vpack.c.b16 %v2172, %v2171
          %v2192 = vpack.c.b16 %v2174, %v2173
          %v2193 = vpack.c.b16 %v2176, %v2175
          %v2194 = vpack.c.b16 %v2178, %v2177
          %2211 = vmatpush.bf16.msra.mxu0 %v2186
          %2212 = vmatpush.bf16.msra.mxu0 %v2185
          %2213 = vmatpush.bf16.msra.mxu0 %v2184
          %2214 = vmatpush.bf16.msra.mxu0 %v2183
          %2215 = vmatpush.bf16.msra.mxu0 %v2182
          %2216 = vmatpush.bf16.msra.mxu0 %v2181
          %2217 = vmatpush.bf16.msra.mxu0 %v2180
          %2218 = vmatpush.bf16.msra.mxu0 %v2179
          %2219 = vmatmul.bf16.gmra.mxu0 %v2083
          %v2220 = vpop.f32.mrf.mxu0
          %v2221 = vadd.f32 0.0, %v2220
          %v2222 = vpop.f32.mrf.mxu0
          %v2223 = vadd.f32 0.0, %v2222
          %2224 = vmatmul.bf16.gmra.mxu0 %v2085
          %v2225 = vpop.f32.mrf.mxu0
          %v2226 = vadd.f32 0.0, %v2225
          %v2227 = vpop.f32.mrf.mxu0
          %v2228 = vadd.f32 0.0, %v2227
          %2229 = vmatmul.bf16.gmra.mxu0 %v2087
          %v2230 = vpop.f32.mrf.mxu0
          %v2231 = vadd.f32 0.0, %v2230
          %v2232 = vpop.f32.mrf.mxu0
          %v2233 = vadd.f32 0.0, %v2232
          %2234 = vmatmul.bf16.gmra.mxu0 %v2089
          %v2235 = vpop.f32.mrf.mxu0
          %v2236 = vadd.f32 0.0, %v2235
          %v2237 = vpop.f32.mrf.mxu0
          %v2238 = vadd.f32 0.0, %v2237
          %2239 = vmatmul.bf16.gmra.mxu0 %v2091
          %v2240 = vpop.f32.mrf.mxu0
          %v2241 = vadd.f32 0.0, %v2240
          %v2242 = vpop.f32.mrf.mxu0
          %v2243 = vadd.f32 0.0, %v2242
          %2244 = vmatmul.bf16.gmra.mxu0 %v2093
          %v2245 = vpop.f32.mrf.mxu0
          %v2246 = vadd.f32 0.0, %v2245
          %v2247 = vpop.f32.mrf.mxu0
          %v2248 = vadd.f32 0.0, %v2247
          %2249 = vmatmul.bf16.gmra.mxu0 %v2095
          %v2250 = vpop.f32.mrf.mxu0
          %v2251 = vadd.f32 0.0, %v2250
          %v2252 = vpop.f32.mrf.mxu0
          %v2253 = vadd.f32 0.0, %v2252
          %2254 = vmatmul.bf16.gmra.mxu0 %v2097
          %v2255 = vpop.f32.mrf.mxu0
          %v2256 = vadd.f32 0.0, %v2255
          %v2257 = vpop.f32.mrf.mxu0
          %v2258 = vadd.f32 0.0, %v2257
          %2259 = vdwg.mxu0
          %2260 = vmatpush.bf16.msra.mxu0 %v2194
          %2261 = vmatpush.bf16.msra.mxu0 %v2193
          %2262 = vmatpush.bf16.msra.mxu0 %v2192
          %2263 = vmatpush.bf16.msra.mxu0 %v2191
          %2264 = vmatpush.bf16.msra.mxu0 %v2190
          %2265 = vmatpush.bf16.msra.mxu0 %v2189
          %2266 = vmatpush.bf16.msra.mxu0 %v2188
          %2267 = vmatpush.bf16.msra.mxu0 %v2187
          %2268 = vmatmul.bf16.gmra.mxu0 %v2084
          %v2269 = vpop.f32.mrf.mxu0
          %v2270 = vadd.f32 %v2221, %v2269
          %v2271 = vpop.f32.mrf.mxu0
          %v2272 = vadd.f32 %v2223, %v2271
          %2273 = vmatmul.bf16.gmra.mxu0 %v2086
          %v2274 = vpop.f32.mrf.mxu0
          %v2275 = vadd.f32 %v2226, %v2274
          %v2276 = vpop.f32.mrf.mxu0
          %v2277 = vadd.f32 %v2228, %v2276
          %2278 = vmatmul.bf16.gmra.mxu0 %v2088
          %v2279 = vpop.f32.mrf.mxu0
          %v2280 = vadd.f32 %v2231, %v2279
          %v2281 = vpop.f32.mrf.mxu0
          %v2282 = vadd.f32 %v2233, %v2281
          %2283 = vmatmul.bf16.gmra.mxu0 %v2090
          %v2284 = vpop.f32.mrf.mxu0
          %v2285 = vadd.f32 %v2236, %v2284
          %v2286 = vpop.f32.mrf.mxu0
          %v2287 = vadd.f32 %v2238, %v2286
          %2288 = vmatmul.bf16.gmra.mxu0 %v2092
          %v2289 = vpop.f32.mrf.mxu0
          %v2290 = vadd.f32 %v2241, %v2289
          %v2291 = vpop.f32.mrf.mxu0
          %v2292 = vadd.f32 %v2243, %v2291
          %2293 = vmatmul.bf16.gmra.mxu0 %v2094
          %v2294 = vpop.f32.mrf.mxu0
          %v2295 = vadd.f32 %v2246, %v2294
          %v2296 = vpop.f32.mrf.mxu0
          %v2297 = vadd.f32 %v2248, %v2296
          %2298 = vmatmul.bf16.gmra.mxu0 %v2096
          %v2299 = vpop.f32.mrf.mxu0
          %v2300 = vadd.f32 %v2251, %v2299
          %v2301 = vpop.f32.mrf.mxu0
          %v2302 = vadd.f32 %v2253, %v2301
          %2303 = vmatmul.bf16.gmra.mxu0 %v2098
          %v2304 = vpop.f32.mrf.mxu0
          %v2305 = vadd.f32 %v2256, %v2304
          %v2306 = vpop.f32.mrf.mxu0
          %v2307 = vadd.f32 %v2258, %v2306
          %2308 = vdwg.mxu0
          %2309 = vst [vmem:[%s434] sm:$0xff] %v2270
          %2310 = vst [vmem:[%s434 + $0x8] sm:$0xff] %v2272
          %2311 = vst [vmem:[%s434 + $0x10] sm:$0xff] %v2275
          %2312 = vst [vmem:[%s434 + $0x18] sm:$0xff] %v2277
          %2313 = vst [vmem:[%s434 + $0x20] sm:$0xff] %v2280
          %2314 = vst [vmem:[%s434 + $0x28] sm:$0xff] %v2282
          %2315 = vst [vmem:[%s434 + $0x30] sm:$0xff] %v2285
          %2316 = vst [vmem:[%s434 + $0x38] sm:$0xff] %v2287
          %2317 = vst [vmem:[%s434 + $0x40] sm:$0xff] %v2290
          %2318 = vst [vmem:[%s434 + $0x48] sm:$0xff] %v2292
          %2319 = vst [vmem:[%s434 + $0x50] sm:$0xff] %v2295
          %2320 = vst [vmem:[%s434 + $0x58] sm:$0xff] %v2297
          %2321 = vst [vmem:[%s434 + $0x60] sm:$0xff] %v2300
          %2322 = vst [vmem:[%s434 + $0x68] sm:$0xff] %v2302
          %2323 = vst [vmem:[%s434 + $0x70] sm:$0xff] %v2305
          %2324 = vst [vmem:[%s434 + $0x78] sm:$0xff] %v2307
        $region84: #{tpu_custom_call.1} parent=55 // pred_fallthru
          _
        %s2325 = sand.u32 %s254, 1
        %s2326 = scalar_lea.sflag [#allocation6], %s2325
        %s2327 = sand.u32 %s254, 1
        %s2328 = smul.addr %s2327, 128
        %s2329 = scalar_lea.vmem [#allocation10], %s2328
        // Predicated region
        $region85: #{tpu_custom_call.1} parent=55 // pred_check
          %p2330 = pneg %p264
        $region86: #{tpu_custom_call.1} parent=55 // pred_check_branch
          %2332 = sbr.rel (%p2330) target = $region88
        $region87: #{tpu_custom_call.1} parent=55 // pred_region
          %s2333 = smul.u32 %s30, %s29
          %s2334 = smul.u32 16, %s2333
          %2336 = vsyncadd %s2326, 0
          %s2337 = smul.addr %s2334, 8
          %s2338 = scalar_lea.hbm %s9, %s2337
          %s2339 = sshll.u32 %s2329, 4
          %s2340 = int_to_ptr.vmem [resolvable:$true] %s2339
          %s2341 = sshll.u32 %s2338, 4
          %s2342 = int_to_ptr.hbm [resolvable:$true] %s2341
          %2347 = dma.vmem_to_hbm [thread:$0]  %s2340, 2048, %s2342, %s2326, 128, 128, 8
        $region88: #{tpu_custom_call.1} parent=55 // pred_fallthru
          _
      $region56: #{tpu_custom_call.1} parent=5 // pred_fallthru
        _
      %p2348 = scmp.le.s32.totalorder 2, %s20
      // Predicated region
      $region89: #{tpu_custom_call.1} parent=5 // pred_check
        %p2349 = pneg %p2348
      $region90: #{tpu_custom_call.1} parent=5 // pred_check_branch
        %2351 = sbr.rel (%p2349) target = $region92
      $region91: #{tpu_custom_call.1} parent=5 // pred_region
        %s2352 = ssub.s32 %s20, 2
        // Predicated region
        $region93: #{tpu_custom_call.1} parent=91 // pred_check
          %p2353 = pneg %p270
        $region94: #{tpu_custom_call.1} parent=91 // pred_check_branch
          %2355 = sbr.rel (%p2353) target = $region96
        $region95: #{tpu_custom_call.1} parent=91 // pred_region
          %s2356 = sand.u32 %s255, 1
          %s2357 = scalar_lea.sflag [#allocation6], %s2356
          %s2358 = sand.u32 %s255, 1
          %s2359 = smul.addr %s2358, 128
          %s2360 = scalar_lea.vmem [#allocation10], %s2359
          %2362 = dma.done %s2357, 2048
        $region96: #{tpu_custom_call.1} parent=91 // pred_fallthru
          _
      $region92: #{tpu_custom_call.1} parent=5 // pred_fallthru
        _
    $region6: #{tpu_custom_call.1} parent=1 // loop_footer
      %s24 = sadd.s32 1, %s20
    $region7: #{tpu_custom_call.1} parent=1 // loop_footer_branch
      %19 = sbr.rel target = $region3
    $region8: #{tpu_custom_call.1} parent=1 // loop_exit
      _
    %2363 = vsyncpa [#allocation5], 1
    %s2364 = scalar_lea.sflag [#allocation5], 1
    %2365 = vsyncpa %s2364, 1
    %2366 = vsyncpa [#allocation8], 1
    %2367 = vsyncpa [#allocation6], 1
    %s2368 = scalar_lea.sflag [#allocation6], 1
    %2369 = vsyncpa %s2368, 1

</llo_original>
